<compile_context>
chip_gen: v5e
topology: v5e:2x2
jax: 0.10.0
libtpu: 0.0.40
codegen_flags: <defaults>
</compile_context>

<pallas_src>
import math

import jax
import jax.numpy as jnp
from jax.experimental import pallas as pl
from jax.experimental.pallas import tpu as pltpu

# ----------------------------- model config (small, BERT-shaped) -------------
VOCAB = 100
MAX_POS = 64
TYPE_VOCAB = 2
HIDDEN = 128          # stands in for 768
NUM_LAYERS = 2        # stands in for 12
NUM_HEADS = 2
HEAD_DIM = HIDDEN // NUM_HEADS
INTERMEDIATE = 256    # stands in for 3072
NUM_CLASSES = 4
NC_PAD = 128          # fc output padded to a full 128-lane slab
LN_EPS = 5e-5         # layer_norm_eps from the module
B = 2
S = 8
B_PER_BLOCK = 1       # batch rows per grid block ("parallel" axis, v7x megacore)
B_BLOCKS = B // B_PER_BLOCK
M_BLK = B_PER_BLOCK * S

_BF16 = jnp.bfloat16


# ----------------------------- in-kernel helpers ------------------------------
def _ln(x, g, b):
    mu = jnp.mean(x, axis=-1, keepdims=True)
    d = x - mu
    var = jnp.mean(d * d, axis=-1, keepdims=True)
    return d * jax.lax.rsqrt(var + LN_EPS) * g + b


def _gelu(y):
    # TODO(synk): HF BERT uses exact erf-GELU; tanh approximation used here.
    c = math.sqrt(2.0 / math.pi)
    return 0.5 * y * (1.0 + jnp.tanh(c * (y + 0.044715 * y * y * y)))


# ----------------------------- fused forward kernel ---------------------------
def _bert_fused_kernel(
    bias_ref, h0_ref, embg_ref, embb_ref,
    qkvw_ref, qkvb_ref, aow_ref, aob_ref, ln1g_ref, ln1b_ref,
    iw_ref, ib_ref, ow_ref, ob_ref, ln2g_ref, ln2b_ref,
    poolw_ref, poolb_ref, fcw_ref, fcb_ref,
    out_ref, h_scratch, ctx_scratch,
):
    layer = pl.program_id(1)

    # ---- first layer step of this batch block: embedding LayerNorm ----------
    @pl.when(layer == 0)
    def _():
        h_scratch[...] = _ln(h0_ref[...].reshape(M_BLK, HIDDEN),
                             embg_ref[...], embb_ref[...])

    h = h_scratch[...]                                           # (M, H) f32

    # ---- fused QKV projection; 1/sqrt(head_dim) already folded into Q weights
    qkv = jnp.dot(h.astype(_BF16), qkvw_ref[...],
                  preferred_element_type=jnp.float32) + qkvb_ref[...]
    qkv_bf = qkv.astype(_BF16)                                   # one full cast

    q3 = qkv_bf[:, 0 * HIDDEN:1 * HIDDEN].reshape(B_PER_BLOCK, S, HIDDEN)
    k3 = qkv_bf[:, 1 * HIDDEN:2 * HIDDEN].reshape(B_PER_BLOCK, S, HIDDEN)
    v3 = qkv_bf[:, 2 * HIDDEN:3 * HIDDEN].reshape(B_PER_BLOCK, S, HIDDEN)

    bias = bias_ref[...]                                         # (BB, 1, S), precomputed

    # ---- per-head attention, batched over the batch block; heads write
    #      straight into the context scratch (no concatenates) ----------------
    for hh in range(NUM_HEADS):                                  # static (NH=2)
        sl = slice(hh * HEAD_DIM, (hh + 1) * HEAD_DIM)
        s = jnp.einsum('bqd,bkd->bqk', q3[:, :, sl], k3[:, :, sl],
                       preferred_element_type=jnp.float32)       # (BB, S, S)
        s = s + bias
        m = jnp.max(s, axis=-1, keepdims=True)
        p = jnp.exp(s - m)
        p = p * pl.reciprocal(jnp.sum(p, axis=-1, keepdims=True), approx=True)
        ctx_h = jnp.einsum('bqk,bkd->bqd', p.astype(_BF16), v3[:, :, sl],
                           preferred_element_type=jnp.float32)   # (BB, S, HD)
        ctx_scratch[:, sl] = ctx_h.reshape(M_BLK, HEAD_DIM)

    # ---- attention output projection + residual + LN1 -----------------------
    attn_out = jnp.dot(ctx_scratch[...].astype(_BF16), aow_ref[...],
                       preferred_element_type=jnp.float32) + aob_ref[...]
    h = _ln(attn_out + h, ln1g_ref[...], ln1b_ref[...])

    # ---- FFN: intermediate (GELU) + output + residual + LN2 -----------------
    inter = jnp.dot(h.astype(_BF16), iw_ref[...],
                    preferred_element_type=jnp.float32) + ib_ref[...]
    inter = _gelu(inter)
    ffn = jnp.dot(inter.astype(_BF16), ow_ref[...],
                  preferred_element_type=jnp.float32) + ob_ref[...]
    h = _ln(ffn + h, ln2g_ref[...], ln2b_ref[...])

    h_scratch[...] = h                                           # stay resident

    # ---- last layer: fused pooler (tanh) + fc + sigmoid, lane-dense write ----
    @pl.when(layer == NUM_LAYERS - 1)
    def _():
        if B_PER_BLOCK == 1:
            first = h_scratch[0:1, :]                            # (1, H) CLS row
        else:
            # one strided sublane gather of rows 0, S, 2S, ...
            first = h_scratch[pl.ds(0, B_PER_BLOCK, stride=S), :]
        pooled = jnp.tanh(
            jnp.dot(first.astype(_BF16), poolw_ref[...],
                    preferred_element_type=jnp.float32) + poolb_ref[...])
        logits = jnp.dot(pooled.astype(_BF16), fcw_ref[...],
                         preferred_element_type=jnp.float32) + fcb_ref[...]
        sig = pl.reciprocal(1.0 + jnp.exp(-logits), approx=True)  # EUP sigmoid
        out_ref[...] = jnp.clip(sig, 0.0, 1.0).reshape(B_PER_BLOCK, 1, NC_PAD)


def fused_forward(h0, bias, params):
    inv2 = lambda bb, l: (0, 0)
    per_batch3 = lambda bb, l: (bb, 0, 0)
    per_layer3 = lambda bb, l: (l, 0, 0)

    in_specs = [
        pl.BlockSpec((B_PER_BLOCK, 1, S), per_batch3),           # additive bias
        pl.BlockSpec((B_PER_BLOCK, S, HIDDEN), per_batch3),      # h0 (pre-LN emb sum)
        pl.BlockSpec((1, HIDDEN), inv2),                         # emb_ln_g
        pl.BlockSpec((1, HIDDEN), inv2),                         # emb_ln_b
        pl.BlockSpec((None, HIDDEN, 3 * HIDDEN), per_layer3),    # qkv_w
        pl.BlockSpec((None, 1, 3 * HIDDEN), per_layer3),         # qkv_b
        pl.BlockSpec((None, HIDDEN, HIDDEN), per_layer3),        # ao_w
        pl.BlockSpec((None, 1, HIDDEN), per_layer3),             # ao_b
        pl.BlockSpec((None, 1, HIDDEN), per_layer3),             # ln1_g
        pl.BlockSpec((None, 1, HIDDEN), per_layer3),             # ln1_b
        pl.BlockSpec((None, HIDDEN, INTERMEDIATE), per_layer3),  # i_w
        pl.BlockSpec((None, 1, INTERMEDIATE), per_layer3),       # i_b
        pl.BlockSpec((None, INTERMEDIATE, HIDDEN), per_layer3),  # o_w
        pl.BlockSpec((None, 1, HIDDEN), per_layer3),             # o_b
        pl.BlockSpec((None, 1, HIDDEN), per_layer3),             # ln2_g
        pl.BlockSpec((None, 1, HIDDEN), per_layer3),             # ln2_b
        pl.BlockSpec((HIDDEN, HIDDEN), inv2),                    # pooler_w
        pl.BlockSpec((1, HIDDEN), inv2),                         # pooler_b
        pl.BlockSpec((HIDDEN, NC_PAD), inv2),                    # fc_w (padded)
        pl.BlockSpec((1, NC_PAD), inv2),                         # fc_b (padded)
    ]

    return pl.pallas_call(
        _bert_fused_kernel,
        out_shape=jax.ShapeDtypeStruct((B, 1, NC_PAD), jnp.float32),
        grid_spec=pltpu.PrefetchScalarGridSpec(
            num_scalar_prefetch=0,
            grid=(B_BLOCKS, NUM_LAYERS),
            in_specs=in_specs,
            out_specs=pl.BlockSpec((B_PER_BLOCK, 1, NC_PAD), per_batch3),
            scratch_shapes=[pltpu.VMEM((M_BLK, HIDDEN), jnp.float32),   # h
                            pltpu.VMEM((M_BLK, HIDDEN), jnp.float32)],  # ctx
        ),
        compiler_params=pltpu.CompilerParams(
            # batch blocks independent (v7x megacore); layers are sequential
            dimension_semantics=("parallel", "arbitrary"),
            vmem_limit_bytes=32 * 1024 * 1024),
    )(
        bias, h0, params["emb_ln_g"], params["emb_ln_b"],
        params["qkv_w"], params["qkv_b"], params["ao_w"], params["ao_b"],
        params["ln1_g"], params["ln1_b"], params["i_w"], params["i_b"],
        params["o_w"], params["o_b"], params["ln2_g"], params["ln2_b"],
        params["pooler_w"], params["pooler_b"],
        params["fc_w_pad"], params["fc_b_pad"],
    )


# ----------------------------- parameter init ---------------------------------
def init_params(key):
    keys = iter(jax.random.split(key, 64))

    def nrm(shape, dtype=jnp.float32):
        return (0.02 * jax.random.normal(next(keys), shape)).astype(dtype)

    params = {
        "word_emb": nrm((VOCAB, HIDDEN)),
        "pos_emb": nrm((MAX_POS, HIDDEN)),
        "type_emb": nrm((TYPE_VOCAB, HIDDEN)),
        "emb_ln_g": jnp.ones((1, HIDDEN), jnp.float32),
        "emb_ln_b": jnp.zeros((1, HIDDEN), jnp.float32),
    }

    def stack(fn):
        return jnp.stack([fn() for _ in range(NUM_LAYERS)], axis=0)

    # Matmul weights stored bf16 (MXU inputs); biases & LN params f32.
    # Q/K/V weights fused into a single [H, 3H] matrix per layer, with the
    # attention score scale 1/sqrt(head_dim) folded into the Q columns.
    scale = 1.0 / math.sqrt(HEAD_DIM)
    qkv_w = stack(lambda: nrm((HIDDEN, 3 * HIDDEN)))
    qkv_b = jnp.zeros((NUM_LAYERS, 1, 3 * HIDDEN), jnp.float32)
    qkv_w = qkv_w.at[:, :, :HIDDEN].multiply(scale)
    qkv_b = qkv_b.at[:, :, :HIDDEN].multiply(scale)
    params["qkv_w"] = qkv_w.astype(jnp.bfloat16)
    params["qkv_b"] = qkv_b

    params["ao_w"] = stack(lambda: nrm((HIDDEN, HIDDEN), jnp.bfloat16))
    params["ao_b"] = jnp.zeros((NUM_LAYERS, 1, HIDDEN), jnp.float32)
    params["ln1_g"] = jnp.ones((NUM_LAYERS, 1, HIDDEN), jnp.float32)
    params["ln1_b"] = jnp.zeros((NUM_LAYERS, 1, HIDDEN), jnp.float32)
    params["i_w"] = stack(lambda: nrm((HIDDEN, INTERMEDIATE), jnp.bfloat16))
    params["i_b"] = jnp.zeros((NUM_LAYERS, 1, INTERMEDIATE), jnp.float32)
    params["o_w"] = stack(lambda: nrm((INTERMEDIATE, HIDDEN), jnp.bfloat16))
    params["o_b"] = jnp.zeros((NUM_LAYERS, 1, HIDDEN), jnp.float32)
    params["ln2_g"] = jnp.ones((NUM_LAYERS, 1, HIDDEN), jnp.float32)
    params["ln2_b"] = jnp.zeros((NUM_LAYERS, 1, HIDDEN), jnp.float32)

    params["pooler_w"] = nrm((HIDDEN, HIDDEN), jnp.bfloat16)
    params["pooler_b"] = jnp.zeros((1, HIDDEN), jnp.float32)

    # fc: [H, num_classes] zero-padded to 128 output lanes (lane-dense store);
    # padding columns are sliced off in the wrapper.
    fc_w = nrm((HIDDEN, NUM_CLASSES), jnp.float32)
    params["fc_w_pad"] = jnp.pad(
        fc_w, ((0, 0), (0, NC_PAD - NUM_CLASSES))).astype(jnp.bfloat16)
    params["fc_b_pad"] = jnp.zeros((1, NC_PAD), jnp.float32)
    return params


# ----------------------------- forward pass ------------------------------------
@jax.jit
def text_model_pred_forward(params, ids, attn_mask, token_id):
    """Mirrors TextModel_pred.forward: BERT -> pooler_output -> fc -> sigmoid."""
    batch, seq = ids.shape
    # Embedding gathers are plain-JAX glue; everything else is one Pallas kernel.
    we = params["word_emb"][ids]                               # [B, S, H]
    pe = params["pos_emb"][jnp.arange(seq)][None, :, :]        # [1, S, H]
    te = params["type_emb"][token_id]                          # [B, S, H]
    h0 = (we + pe + te).astype(jnp.float32)                    # [B, S, H]
    # Additive attention bias precomputed once (not re-derived per layer).
    bias = ((1.0 - attn_mask.astype(jnp.float32)) * -10000.0)[:, None, :]  # [B,1,S]
    # Dropout (self.bert_drop) is not applied in the reference forward.
    out = fused_forward(h0, bias, params)                      # [B, 1, 128]
    return out.reshape(batch, NC_PAD)[:, :NUM_CLASSES]         # [B, num_classes]


# ----------------------------- main ---------------------------------------------
if __name__ == "__main__":
    key = jax.random.PRNGKey(0)
    k_param, k_ids, k_type = jax.random.split(key, 3)

    params = init_params(k_param)

    ids = jax.random.randint(k_ids, (B, S), 0, VOCAB, dtype=jnp.int32)
    attn_mask = jnp.ones((B, S), jnp.int32).at[1, S - 2:].set(0)   # pad last 2 of row 1
    token_id = jax.random.randint(k_type, (B, S), 0, TYPE_VOCAB, dtype=jnp.int32)

    out = text_model_pred_forward(params, ids, attn_mask, token_id)
    out = jax.block_until_ready(out)

    assert out.shape == (B, NUM_CLASSES)
    assert bool(jnp.all(jnp.isfinite(out)))
    assert bool(jnp.all((out >= 0.0) & (out <= 1.0)))
    print("KERNEL_OK")
</pallas_src>

<mosaic_0001>
module attributes {stable_mosaic.version = 11 : i64} {
  func.func @_bert_fused_kernel(%arg0: i32, %arg1: i32, %arg2: memref<1x1x8xf32, #tpu.memory_space<vmem>>, %arg3: memref<1x8x128xf32, #tpu.memory_space<vmem>>, %arg4: memref<1x128xf32, #tpu.memory_space<vmem>>, %arg5: memref<1x128xf32, #tpu.memory_space<vmem>>, %arg6: memref<1x128x384xbf16, #tpu.memory_space<vmem>>, %arg7: memref<1x1x384xf32, #tpu.memory_space<vmem>>, %arg8: memref<1x128x128xbf16, #tpu.memory_space<vmem>>, %arg9: memref<1x1x128xf32, #tpu.memory_space<vmem>>, %arg10: memref<1x1x128xf32, #tpu.memory_space<vmem>>, %arg11: memref<1x1x128xf32, #tpu.memory_space<vmem>>, %arg12: memref<1x128x256xbf16, #tpu.memory_space<vmem>>, %arg13: memref<1x1x256xf32, #tpu.memory_space<vmem>>, %arg14: memref<1x256x128xbf16, #tpu.memory_space<vmem>>, %arg15: memref<1x1x128xf32, #tpu.memory_space<vmem>>, %arg16: memref<1x1x128xf32, #tpu.memory_space<vmem>>, %arg17: memref<1x1x128xf32, #tpu.memory_space<vmem>>, %arg18: memref<128x128xbf16, #tpu.memory_space<vmem>>, %arg19: memref<1x128xf32, #tpu.memory_space<vmem>>, %arg20: memref<128x128xbf16, #tpu.memory_space<vmem>>, %arg21: memref<1x128xf32, #tpu.memory_space<vmem>>, %arg22: memref<1x1x128xf32, #tpu.memory_space<vmem>>, %arg23: memref<8x128xf32, #tpu.memory_space<vmem>>, %arg24: memref<8x128xf32, #tpu.memory_space<vmem>>) attributes {dimension_semantics = [#tpu.dimension_semantics<parallel>, #tpu.dimension_semantics<arbitrary>], iteration_bounds = array<i64: 2, 2>, scalar_prefetch = 0 : i64, scratch_operands = 2 : i64, tpu.core_type = #tpu.core_type<tc>, window_params = [{transform_indices = @transform_0, window_bounds = array<i64: 1, 1, 8>}, {transform_indices = @transform_1, window_bounds = array<i64: 1, 8, 128>}, {pipeline_mode = #tpu.pipeline_mode<synchronous>, transform_indices = @transform_2, window_bounds = array<i64: 1, 128>}, {pipeline_mode = #tpu.pipeline_mode<synchronous>, transform_indices = @transform_3, window_bounds = array<i64: 1, 128>}, {transform_indices = @transform_4, window_bounds = array<i64: 1, 128, 384>}, {transform_indices = @transform_5, window_bounds = array<i64: 1, 1, 384>}, {transform_indices = @transform_6, window_bounds = array<i64: 1, 128, 128>}, {transform_indices = @transform_7, window_bounds = array<i64: 1, 1, 128>}, {transform_indices = @transform_8, window_bounds = array<i64: 1, 1, 128>}, {transform_indices = @transform_9, window_bounds = array<i64: 1, 1, 128>}, {transform_indices = @transform_10, window_bounds = array<i64: 1, 128, 256>}, {transform_indices = @transform_11, window_bounds = array<i64: 1, 1, 256>}, {transform_indices = @transform_12, window_bounds = array<i64: 1, 256, 128>}, {transform_indices = @transform_13, window_bounds = array<i64: 1, 1, 128>}, {transform_indices = @transform_14, window_bounds = array<i64: 1, 1, 128>}, {transform_indices = @transform_15, window_bounds = array<i64: 1, 1, 128>}, {pipeline_mode = #tpu.pipeline_mode<synchronous>, transform_indices = @transform_16, window_bounds = array<i64: 128, 128>}, {pipeline_mode = #tpu.pipeline_mode<synchronous>, transform_indices = @transform_17, window_bounds = array<i64: 1, 128>}, {pipeline_mode = #tpu.pipeline_mode<synchronous>, transform_indices = @transform_18, window_bounds = array<i64: 128, 128>}, {pipeline_mode = #tpu.pipeline_mode<synchronous>, transform_indices = @transform_19, window_bounds = array<i64: 1, 128>}, {transform_indices = @transform_20, window_bounds = array<i64: 1, 1, 128>}]} {
    %c0_i32 = arith.constant 0 : i32
    %0 = arith.cmpi eq, %arg1, %c0_i32 : i32
    %1 = arith.extui %0 : i1 to i32
    %c0_i32_0 = arith.constant 0 : i32
    %2 = arith.cmpi ne, %1, %c0_i32_0 : i32
    scf.if %2 {
      %c0_74 = arith.constant 0 : index
      %c0_75 = arith.constant 0 : index
      %c0_76 = arith.constant 0 : index
      %152 = vector.load %arg3[%c0_74, %c0_75, %c0_76] : memref<1x8x128xf32, #tpu.memory_space<vmem>>, vector<1x8x128xf32>
      %153 = vector.shape_cast %152 : vector<1x8x128xf32> to vector<8x128xf32>
      %c0_77 = arith.constant 0 : index
      %c0_78 = arith.constant 0 : index
      %154 = vector.load %arg4[%c0_77, %c0_78] : memref<1x128xf32, #tpu.memory_space<vmem>>, vector<1x128xf32>
      %c0_79 = arith.constant 0 : index
      %c0_80 = arith.constant 0 : index
      %155 = vector.load %arg5[%c0_79, %c0_80] : memref<1x128xf32, #tpu.memory_space<vmem>>, vector<1x128xf32>
      %cst_81 = arith.constant dense<0.000000e+00> : vector<8xf32>
      %156 = vector.multi_reduction <add>, %153, %cst_81 [1] : vector<8x128xf32> to vector<8xf32>
      %157 = vector.shape_cast %156 : vector<8xf32> to vector<8x1xf32>
      %cst_82 = arith.constant 1.280000e+02 : f32
      %158 = vector.broadcast %cst_82 : f32 to vector<8x1xf32>
      %159 = arith.divf %157, %158 : vector<8x1xf32>
      %160 = vector.broadcast %159 : vector<8x1xf32> to vector<8x128xf32>
      %161 = arith.subf %153, %160 : vector<8x128xf32>
      %162 = arith.mulf %161, %161 : vector<8x128xf32>
      %cst_83 = arith.constant dense<0.000000e+00> : vector<8xf32>
      %163 = vector.multi_reduction <add>, %162, %cst_83 [1] : vector<8x128xf32> to vector<8xf32>
      %164 = vector.shape_cast %163 : vector<8xf32> to vector<8x1xf32>
      %cst_84 = arith.constant 1.280000e+02 : f32
      %165 = vector.broadcast %cst_84 : f32 to vector<8x1xf32>
      %166 = arith.divf %164, %165 : vector<8x1xf32>
      %cst_85 = arith.constant 5.000000e-05 : f32
      %167 = vector.broadcast %cst_85 : f32 to vector<8x1xf32>
      %168 = arith.addf %166, %167 : vector<8x1xf32>
      %169 = math.rsqrt %168 : vector<8x1xf32>
      %170 = vector.broadcast %169 : vector<8x1xf32> to vector<8x128xf32>
      %171 = arith.mulf %161, %170 : vector<8x128xf32>
      %172 = vector.broadcast %154 : vector<1x128xf32> to vector<8x128xf32>
      %173 = arith.mulf %171, %172 : vector<8x128xf32>
      %174 = vector.broadcast %155 : vector<1x128xf32> to vector<8x128xf32>
      %175 = arith.addf %173, %174 : vector<8x128xf32>
      %c0_86 = arith.constant 0 : index
      %c0_87 = arith.constant 0 : index
      %176 = vector.load %arg23[%c0_86, %c0_87] : memref<8x128xf32, #tpu.memory_space<vmem>>, vector<8x128xf32>
      tpu.vector_store %arg23[%c0_86, %c0_87], %175 {strides = array<i32>} : memref<8x128xf32, #tpu.memory_space<vmem>>, vector<8x128xf32>,
    } else {
    }
    %c0 = arith.constant 0 : index
    %c0_1 = arith.constant 0 : index
    %3 = vector.load %arg23[%c0, %c0_1] : memref<8x128xf32, #tpu.memory_space<vmem>>, vector<8x128xf32>
    %4 = arith.truncf %3 : vector<8x128xf32> to vector<8x128xbf16>
    %c0_2 = arith.constant 0 : index
    %c0_3 = arith.constant 0 : index
    %c0_4 = arith.constant 0 : index
    %5 = vector.load %arg6[%c0_2, %c0_3, %c0_4] : memref<1x128x384xbf16, #tpu.memory_space<vmem>>, vector<1x128x384xbf16>
    %6 = vector.shape_cast %5 : vector<1x128x384xbf16> to vector<128x384xbf16>
    %cst = arith.constant dense<0.000000e+00> : vector<8x384xf32>
    %7 = tpu.matmul %4, %6, %cst {dimension_numbers = #tpu.dot_dimension_numbers<[1], [0], [0], [1], [0, 0, 1, 1], [], []>} : vector<8x128xbf16>, vector<128x384xbf16>, vector<8x384xf32> -> vector<8x384xf32>
    %c0_5 = arith.constant 0 : index
    %c0_6 = arith.constant 0 : index
    %c0_7 = arith.constant 0 : index
    %8 = vector.load %arg7[%c0_5, %c0_6, %c0_7] : memref<1x1x384xf32, #tpu.memory_space<vmem>>, vector<1x1x384xf32>
    %9 = vector.shape_cast %8 : vector<1x1x384xf32> to vector<1x384xf32>
    %10 = vector.broadcast %9 : vector<1x384xf32> to vector<8x384xf32>
    %11 = arith.addf %7, %10 : vector<8x384xf32>
    %12 = arith.truncf %11 : vector<8x384xf32> to vector<8x384xbf16>
    %13 = vector.extract_strided_slice %12 {offsets = [0, 0], sizes = [8, 128], strides = [1, 1]} : vector<8x384xbf16> to vector<8x128xbf16>
    %14 = vector.shape_cast %13 : vector<8x128xbf16> to vector<1x8x128xbf16>
    %15 = vector.extract_strided_slice %12 {offsets = [0, 128], sizes = [8, 128], strides = [1, 1]} : vector<8x384xbf16> to vector<8x128xbf16>
    %16 = vector.shape_cast %15 : vector<8x128xbf16> to vector<1x8x128xbf16>
    %17 = vector.extract_strided_slice %12 {offsets = [0, 256], sizes = [8, 128], strides = [1, 1]} : vector<8x384xbf16> to vector<8x128xbf16>
    %18 = vector.shape_cast %17 : vector<8x128xbf16> to vector<1x8x128xbf16>
    %c0_8 = arith.constant 0 : index
    %c0_9 = arith.constant 0 : index
    %c0_10 = arith.constant 0 : index
    %19 = vector.load %arg2[%c0_8, %c0_9, %c0_10] : memref<1x1x8xf32, #tpu.memory_space<vmem>>, vector<1x1x8xf32>
    %20 = vector.extract_strided_slice %14 {offsets = [0, 0, 0], sizes = [1, 8, 64], strides = [1, 1, 1]} : vector<1x8x128xbf16> to vector<1x8x64xbf16>
    %21 = vector.extract_strided_slice %16 {offsets = [0, 0, 0], sizes = [1, 8, 64], strides = [1, 1, 1]} : vector<1x8x128xbf16> to vector<1x8x64xbf16>
    "tpu.trace_start"() <{level = 10 : i32, message = "bqd,bkd->bqk"}> : () -> ()
    %cst_11 = arith.constant dense<0.000000e+00> : vector<1x8x8xf32>
    %22 = tpu.matmul %20, %21, %cst_11 {dimension_numbers = #tpu.dot_dimension_numbers<[2], [2], [1], [1], [0, 0, 0, 1, 1, 1], [0], [0]>} : vector<1x8x64xbf16>, vector<1x8x64xbf16>, vector<1x8x8xf32> -> vector<1x8x8xf32>
    "tpu.trace_stop"() : () -> ()
    %23 = vector.broadcast %19 : vector<1x1x8xf32> to vector<1x8x8xf32>
    %24 = arith.addf %22, %23 : vector<1x8x8xf32>
    %cst_12 = arith.constant dense<0xFF800000> : vector<1x8xf32>
    %25 = vector.multi_reduction <maximumf>, %24, %cst_12 [2] : vector<1x8x8xf32> to vector<1x8xf32>
    %26 = vector.shape_cast %25 : vector<1x8xf32> to vector<1x8x1xf32>
    %27 = vector.broadcast %26 : vector<1x8x1xf32> to vector<1x8x8xf32>
    %28 = arith.subf %24, %27 : vector<1x8x8xf32>
    %29 = math.exp %28 : vector<1x8x8xf32>
    %cst_13 = arith.constant dense<0.000000e+00> : vector<1x8xf32>
    %30 = vector.multi_reduction <add>, %29, %cst_13 [2] : vector<1x8x8xf32> to vector<1x8xf32>
    %31 = vector.shape_cast %30 : vector<1x8xf32> to vector<1x8x1xf32>
    %32 = tpu.reciprocal %31 {approx = true} : vector<1x8x1xf32> -> vector<1x8x1xf32>
    %33 = vector.broadcast %32 : vector<1x8x1xf32> to vector<1x8x8xf32>
    %34 = arith.mulf %29, %33 : vector<1x8x8xf32>
    %35 = arith.truncf %34 : vector<1x8x8xf32> to vector<1x8x8xbf16>
    %36 = vector.extract_strided_slice %18 {offsets = [0, 0, 0], sizes = [1, 8, 64], strides = [1, 1, 1]} : vector<1x8x128xbf16> to vector<1x8x64xbf16>
    "tpu.trace_start"() <{level = 10 : i32, message = "bqk,bkd->bqd"}> : () -> ()
    %cst_14 = arith.constant dense<0.000000e+00> : vector<1x8x64xf32>
    %37 = tpu.matmul %35, %36, %cst_14 {dimension_numbers = #tpu.dot_dimension_numbers<[2], [1], [1], [2], [0, 0, 0, 1, 1, 2], [0], [0]>} : vector<1x8x8xbf16>, vector<1x8x64xbf16>, vector<1x8x64xf32> -> vector<1x8x64xf32>
    "tpu.trace_stop"() : () -> ()
    %38 = vector.shape_cast %37 : vector<1x8x64xf32> to vector<8x64xf32>
    %c0_15 = arith.constant 0 : index
    %c0_16 = arith.constant 0 : index
    %39 = vector.load %arg24[%c0_15, %c0_16] : memref<8x128xf32, #tpu.memory_space<vmem>>, vector<8x64xf32>
    tpu.vector_store %arg24[%c0_15, %c0_16], %38 {strides = array<i32>} : memref<8x128xf32, #tpu.memory_space<vmem>>, vector<8x64xf32>,
    %40 = vector.extract_strided_slice %14 {offsets = [0, 0, 64], sizes = [1, 8, 64], strides = [1, 1, 1]} : vector<1x8x128xbf16> to vector<1x8x64xbf16>
    %41 = vector.extract_strided_slice %16 {offsets = [0, 0, 64], sizes = [1, 8, 64], strides = [1, 1, 1]} : vector<1x8x128xbf16> to vector<1x8x64xbf16>
    "tpu.trace_start"() <{level = 10 : i32, message = "bqd,bkd->bqk"}> : () -> ()
    %cst_17 = arith.constant dense<0.000000e+00> : vector<1x8x8xf32>
    %42 = tpu.matmul %40, %41, %cst_17 {dimension_numbers = #tpu.dot_dimension_numbers<[2], [2], [1], [1], [0, 0, 0, 1, 1, 1], [0], [0]>} : vector<1x8x64xbf16>, vector<1x8x64xbf16>, vector<1x8x8xf32> -> vector<1x8x8xf32>
    "tpu.trace_stop"() : () -> ()
    %43 = vector.broadcast %19 : vector<1x1x8xf32> to vector<1x8x8xf32>
    %44 = arith.addf %42, %43 : vector<1x8x8xf32>
    %cst_18 = arith.constant dense<0xFF800000> : vector<1x8xf32>
    %45 = vector.multi_reduction <maximumf>, %44, %cst_18 [2] : vector<1x8x8xf32> to vector<1x8xf32>
    %46 = vector.shape_cast %45 : vector<1x8xf32> to vector<1x8x1xf32>
    %47 = vector.broadcast %46 : vector<1x8x1xf32> to vector<1x8x8xf32>
    %48 = arith.subf %44, %47 : vector<1x8x8xf32>
    %49 = math.exp %48 : vector<1x8x8xf32>
    %cst_19 = arith.constant dense<0.000000e+00> : vector<1x8xf32>
    %50 = vector.multi_reduction <add>, %49, %cst_19 [2] : vector<1x8x8xf32> to vector<1x8xf32>
    %51 = vector.shape_cast %50 : vector<1x8xf32> to vector<1x8x1xf32>
    %52 = tpu.reciprocal %51 {approx = true} : vector<1x8x1xf32> -> vector<1x8x1xf32>
    %53 = vector.broadcast %52 : vector<1x8x1xf32> to vector<1x8x8xf32>
    %54 = arith.mulf %49, %53 : vector<1x8x8xf32>
    %55 = arith.truncf %54 : vector<1x8x8xf32> to vector<1x8x8xbf16>
    %56 = vector.extract_strided_slice %18 {offsets = [0, 0, 64], sizes = [1, 8, 64], strides = [1, 1, 1]} : vector<1x8x128xbf16> to vector<1x8x64xbf16>
    "tpu.trace_start"() <{level = 10 : i32, message = "bqk,bkd->bqd"}> : () -> ()
    %cst_20 = arith.constant dense<0.000000e+00> : vector<1x8x64xf32>
    %57 = tpu.matmul %55, %56, %cst_20 {dimension_numbers = #tpu.dot_dimension_numbers<[2], [1], [1], [2], [0, 0, 0, 1, 1, 2], [0], [0]>} : vector<1x8x8xbf16>, vector<1x8x64xbf16>, vector<1x8x64xf32> -> vector<1x8x64xf32>
    "tpu.trace_stop"() : () -> ()
    %58 = vector.shape_cast %57 : vector<1x8x64xf32> to vector<8x64xf32>
    %c0_21 = arith.constant 0 : index
    %c64 = arith.constant 64 : index
    %59 = vector.load %arg24[%c0_21, %c64] : memref<8x128xf32, #tpu.memory_space<vmem>>, vector<8x64xf32>
    tpu.vector_store %arg24[%c0_21, %c64], %58 {strides = array<i32>} : memref<8x128xf32, #tpu.memory_space<vmem>>, vector<8x64xf32>,
    %c0_22 = arith.constant 0 : index
    %c0_23 = arith.constant 0 : index
    %60 = vector.load %arg24[%c0_22, %c0_23] : memref<8x128xf32, #tpu.memory_space<vmem>>, vector<8x128xf32>
    %61 = arith.truncf %60 : vector<8x128xf32> to vector<8x128xbf16>
    %c0_24 = arith.constant 0 : index
    %c0_25 = arith.constant 0 : index
    %c0_26 = arith.constant 0 : index
    %62 = vector.load %arg8[%c0_24, %c0_25, %c0_26] : memref<1x128x128xbf16, #tpu.memory_space<vmem>>, vector<1x128x128xbf16>
    %63 = vector.shape_cast %62 : vector<1x128x128xbf16> to vector<128x128xbf16>
    %cst_27 = arith.constant dense<0.000000e+00> : vector<8x128xf32>
    %64 = tpu.matmul %61, %63, %cst_27 {dimension_numbers = #tpu.dot_dimension_numbers<[1], [0], [0], [1], [0, 0, 1, 1], [], []>} : vector<8x128xbf16>, vector<128x128xbf16>, vector<8x128xf32> -> vector<8x128xf32>
    %c0_28 = arith.constant 0 : index
    %c0_29 = arith.constant 0 : index
    %c0_30 = arith.constant 0 : index
    %65 = vector.load %arg9[%c0_28, %c0_29, %c0_30] : memref<1x1x128xf32, #tpu.memory_space<vmem>>, vector<1x1x128xf32>
    %66 = vector.shape_cast %65 : vector<1x1x128xf32> to vector<1x128xf32>
    %67 = vector.broadcast %66 : vector<1x128xf32> to vector<8x128xf32>
    %68 = arith.addf %64, %67 : vector<8x128xf32>
    %69 = arith.addf %68, %3 : vector<8x128xf32>
    %c0_31 = arith.constant 0 : index
    %c0_32 = arith.constant 0 : index
    %c0_33 = arith.constant 0 : index
    %70 = vector.load %arg10[%c0_31, %c0_32, %c0_33] : memref<1x1x128xf32, #tpu.memory_space<vmem>>, vector<1x1x128xf32>
    %71 = vector.shape_cast %70 : vector<1x1x128xf32> to vector<1x128xf32>
    %c0_34 = arith.constant 0 : index
    %c0_35 = arith.constant 0 : index
    %c0_36 = arith.constant 0 : index
    %72 = vector.load %arg11[%c0_34, %c0_35, %c0_36] : memref<1x1x128xf32, #tpu.memory_space<vmem>>, vector<1x1x128xf32>
    %73 = vector.shape_cast %72 : vector<1x1x128xf32> to vector<1x128xf32>
    %cst_37 = arith.constant dense<0.000000e+00> : vector<8xf32>
    %74 = vector.multi_reduction <add>, %69, %cst_37 [1] : vector<8x128xf32> to vector<8xf32>
    %75 = vector.shape_cast %74 : vector<8xf32> to vector<8x1xf32>
    %cst_38 = arith.constant 1.280000e+02 : f32
    %76 = vector.broadcast %cst_38 : f32 to vector<8x1xf32>
    %77 = arith.divf %75, %76 : vector<8x1xf32>
    %78 = vector.broadcast %77 : vector<8x1xf32> to vector<8x128xf32>
    %79 = arith.subf %69, %78 : vector<8x128xf32>
    %80 = arith.mulf %79, %79 : vector<8x128xf32>
    %cst_39 = arith.constant dense<0.000000e+00> : vector<8xf32>
    %81 = vector.multi_reduction <add>, %80, %cst_39 [1] : vector<8x128xf32> to vector<8xf32>
    %82 = vector.shape_cast %81 : vector<8xf32> to vector<8x1xf32>
    %cst_40 = arith.constant 1.280000e+02 : f32
    %83 = vector.broadcast %cst_40 : f32 to vector<8x1xf32>
    %84 = arith.divf %82, %83 : vector<8x1xf32>
    %cst_41 = arith.constant 5.000000e-05 : f32
    %85 = vector.broadcast %cst_41 : f32 to vector<8x1xf32>
    %86 = arith.addf %84, %85 : vector<8x1xf32>
    %87 = math.rsqrt %86 : vector<8x1xf32>
    %88 = vector.broadcast %87 : vector<8x1xf32> to vector<8x128xf32>
    %89 = arith.mulf %79, %88 : vector<8x128xf32>
    %90 = vector.broadcast %71 : vector<1x128xf32> to vector<8x128xf32>
    %91 = arith.mulf %89, %90 : vector<8x128xf32>
    %92 = vector.broadcast %73 : vector<1x128xf32> to vector<8x128xf32>
    %93 = arith.addf %91, %92 : vector<8x128xf32>
    %94 = arith.truncf %93 : vector<8x128xf32> to vector<8x128xbf16>
    %c0_42 = arith.constant 0 : index
    %c0_43 = arith.constant 0 : index
    %c0_44 = arith.constant 0 : index
    %95 = vector.load %arg12[%c0_42, %c0_43, %c0_44] : memref<1x128x256xbf16, #tpu.memory_space<vmem>>, vector<1x128x256xbf16>
    %96 = vector.shape_cast %95 : vector<1x128x256xbf16> to vector<128x256xbf16>
    %cst_45 = arith.constant dense<0.000000e+00> : vector<8x256xf32>
    %97 = tpu.matmul %94, %96, %cst_45 {dimension_numbers = #tpu.dot_dimension_numbers<[1], [0], [0], [1], [0, 0, 1, 1], [], []>} : vector<8x128xbf16>, vector<128x256xbf16>, vector<8x256xf32> -> vector<8x256xf32>
    %c0_46 = arith.constant 0 : index
    %c0_47 = arith.constant 0 : index
    %c0_48 = arith.constant 0 : index
    %98 = vector.load %arg13[%c0_46, %c0_47, %c0_48] : memref<1x1x256xf32, #tpu.memory_space<vmem>>, vector<1x1x256xf32>
    %99 = vector.shape_cast %98 : vector<1x1x256xf32> to vector<1x256xf32>
    %100 = vector.broadcast %99 : vector<1x256xf32> to vector<8x256xf32>
    %101 = arith.addf %97, %100 : vector<8x256xf32>
    %cst_49 = arith.constant 5.000000e-01 : f32
    %102 = vector.broadcast %cst_49 : f32 to vector<8x256xf32>
    %103 = arith.mulf %102, %101 : vector<8x256xf32>
    %cst_50 = arith.constant 4.471500e-02 : f32
    %104 = vector.broadcast %cst_50 : f32 to vector<8x256xf32>
    %105 = arith.mulf %104, %101 : vector<8x256xf32>
    %106 = arith.mulf %105, %101 : vector<8x256xf32>
    %107 = arith.mulf %106, %101 : vector<8x256xf32>
    %108 = arith.addf %101, %107 : vector<8x256xf32>
    %cst_51 = arith.constant 0.797884583 : f32
    %109 = vector.broadcast %cst_51 : f32 to vector<8x256xf32>
    %110 = arith.mulf %109, %108 : vector<8x256xf32>
    %111 = math.tanh %110 : vector<8x256xf32>
    %cst_52 = arith.constant 1.000000e+00 : f32
    %112 = vector.broadcast %cst_52 : f32 to vector<8x256xf32>
    %113 = arith.addf %112, %111 : vector<8x256xf32>
    %114 = arith.mulf %103, %113 : vector<8x256xf32>
    %115 = arith.truncf %114 : vector<8x256xf32> to vector<8x256xbf16>
    %c0_53 = arith.constant 0 : index
    %c0_54 = arith.constant 0 : index
    %c0_55 = arith.constant 0 : index
    %116 = vector.load %arg14[%c0_53, %c0_54, %c0_55] : memref<1x256x128xbf16, #tpu.memory_space<vmem>>, vector<1x256x128xbf16>
    %117 = vector.shape_cast %116 : vector<1x256x128xbf16> to vector<256x128xbf16>
    %cst_56 = arith.constant dense<0.000000e+00> : vector<8x128xf32>
    %118 = tpu.matmul %115, %117, %cst_56 {dimension_numbers = #tpu.dot_dimension_numbers<[1], [0], [0], [1], [0, 0, 1, 1], [], []>} : vector<8x256xbf16>, vector<256x128xbf16>, vector<8x128xf32> -> vector<8x128xf32>
    %c0_57 = arith.constant 0 : index
    %c0_58 = arith.constant 0 : index
    %c0_59 = arith.constant 0 : index
    %119 = vector.load %arg15[%c0_57, %c0_58, %c0_59] : memref<1x1x128xf32, #tpu.memory_space<vmem>>, vector<1x1x128xf32>
    %120 = vector.shape_cast %119 : vector<1x1x128xf32> to vector<1x128xf32>
    %121 = vector.broadcast %120 : vector<1x128xf32> to vector<8x128xf32>
    %122 = arith.addf %118, %121 : vector<8x128xf32>
    %123 = arith.addf %122, %93 : vector<8x128xf32>
    %c0_60 = arith.constant 0 : index
    %c0_61 = arith.constant 0 : index
    %c0_62 = arith.constant 0 : index
    %124 = vector.load %arg16[%c0_60, %c0_61, %c0_62] : memref<1x1x128xf32, #tpu.memory_space<vmem>>, vector<1x1x128xf32>
    %125 = vector.shape_cast %124 : vector<1x1x128xf32> to vector<1x128xf32>
    %c0_63 = arith.constant 0 : index
    %c0_64 = arith.constant 0 : index
    %c0_65 = arith.constant 0 : index
    %126 = vector.load %arg17[%c0_63, %c0_64, %c0_65] : memref<1x1x128xf32, #tpu.memory_space<vmem>>, vector<1x1x128xf32>
    %127 = vector.shape_cast %126 : vector<1x1x128xf32> to vector<1x128xf32>
    %cst_66 = arith.constant dense<0.000000e+00> : vector<8xf32>
    %128 = vector.multi_reduction <add>, %123, %cst_66 [1] : vector<8x128xf32> to vector<8xf32>
    %129 = vector.shape_cast %128 : vector<8xf32> to vector<8x1xf32>
    %cst_67 = arith.constant 1.280000e+02 : f32
    %130 = vector.broadcast %cst_67 : f32 to vector<8x1xf32>
    %131 = arith.divf %129, %130 : vector<8x1xf32>
    %132 = vector.broadcast %131 : vector<8x1xf32> to vector<8x128xf32>
    %133 = arith.subf %123, %132 : vector<8x128xf32>
    %134 = arith.mulf %133, %133 : vector<8x128xf32>
    %cst_68 = arith.constant dense<0.000000e+00> : vector<8xf32>
    %135 = vector.multi_reduction <add>, %134, %cst_68 [1] : vector<8x128xf32> to vector<8xf32>
    %136 = vector.shape_cast %135 : vector<8xf32> to vector<8x1xf32>
    %cst_69 = arith.constant 1.280000e+02 : f32
    %137 = vector.broadcast %cst_69 : f32 to vector<8x1xf32>
    %138 = arith.divf %136, %137 : vector<8x1xf32>
    %cst_70 = arith.constant 5.000000e-05 : f32
    %139 = vector.broadcast %cst_70 : f32 to vector<8x1xf32>
    %140 = arith.addf %138, %139 : vector<8x1xf32>
    %141 = math.rsqrt %140 : vector<8x1xf32>
    %142 = vector.broadcast %141 : vector<8x1xf32> to vector<8x128xf32>
    %143 = arith.mulf %133, %142 : vector<8x128xf32>
    %144 = vector.broadcast %125 : vector<1x128xf32> to vector<8x128xf32>
    %145 = arith.mulf %143, %144 : vector<8x128xf32>
    %146 = vector.broadcast %127 : vector<1x128xf32> to vector<8x128xf32>
    %147 = arith.addf %145, %146 : vector<8x128xf32>
    %c0_71 = arith.constant 0 : index
    %c0_72 = arith.constant 0 : index
    %148 = vector.load %arg23[%c0_71, %c0_72] : memref<8x128xf32, #tpu.memory_space<vmem>>, vector<8x128xf32>
    tpu.vector_store %arg23[%c0_71, %c0_72], %147 {strides = array<i32>} : memref<8x128xf32, #tpu.memory_space<vmem>>, vector<8x128xf32>,
    %c1_i32 = arith.constant 1 : i32
    %149 = arith.cmpi eq, %arg1, %c1_i32 : i32
    %150 = arith.extui %149 : i1 to i32
    %c0_i32_73 = arith.constant 0 : i32
    %151 = arith.cmpi ne, %150, %c0_i32_73 : i32
    scf.if %151 {
      %c0_74 = arith.constant 0 : index
      %c0_75 = arith.constant 0 : index
      %152 = vector.load %arg23[%c0_74, %c0_75] : memref<8x128xf32, #tpu.memory_space<vmem>>, vector<1x128xf32>
      %153 = arith.truncf %152 : vector<1x128xf32> to vector<1x128xbf16>
      %c0_76 = arith.constant 0 : index
      %c0_77 = arith.constant 0 : index
      %154 = vector.load %arg18[%c0_76, %c0_77] : memref<128x128xbf16, #tpu.memory_space<vmem>>, vector<128x128xbf16>
      %cst_78 = arith.constant dense<0.000000e+00> : vector<1x128xf32>
      %155 = tpu.matmul %153, %154, %cst_78 {dimension_numbers = #tpu.dot_dimension_numbers<[1], [0], [0], [1], [0, 0, 1, 1], [], []>} : vector<1x128xbf16>, vector<128x128xbf16>, vector<1x128xf32> -> vector<1x128xf32>
      %c0_79 = arith.constant 0 : index
      %c0_80 = arith.constant 0 : index
      %156 = vector.load %arg19[%c0_79, %c0_80] : memref<1x128xf32, #tpu.memory_space<vmem>>, vector<1x128xf32>
      %157 = arith.addf %155, %156 : vector<1x128xf32>
      %158 = math.tanh %157 : vector<1x128xf32>
      %159 = arith.truncf %158 : vector<1x128xf32> to vector<1x128xbf16>
      %c0_81 = arith.constant 0 : index
      %c0_82 = arith.constant 0 : index
      %160 = vector.load %arg20[%c0_81, %c0_82] : memref<128x128xbf16, #tpu.memory_space<vmem>>, vector<128x128xbf16>
      %cst_83 = arith.constant dense<0.000000e+00> : vector<1x128xf32>
      %161 = tpu.matmul %159, %160, %cst_83 {dimension_numbers = #tpu.dot_dimension_numbers<[1], [0], [0], [1], [0, 0, 1, 1], [], []>} : vector<1x128xbf16>, vector<128x128xbf16>, vector<1x128xf32> -> vector<1x128xf32>
      %c0_84 = arith.constant 0 : index
      %c0_85 = arith.constant 0 : index
      %162 = vector.load %arg21[%c0_84, %c0_85] : memref<1x128xf32, #tpu.memory_space<vmem>>, vector<1x128xf32>
      %163 = arith.addf %161, %162 : vector<1x128xf32>
      %cst_86 = arith.constant 0.000000e+00 : f32
      %164 = vector.broadcast %cst_86 : f32 to vector<1x128xf32>
      %165 = arith.subf %164, %163 : vector<1x128xf32>
      %166 = math.exp %165 : vector<1x128xf32>
      %cst_87 = arith.constant 1.000000e+00 : f32
      %167 = vector.broadcast %cst_87 : f32 to vector<1x128xf32>
      %168 = arith.addf %167, %166 : vector<1x128xf32>
      %169 = tpu.reciprocal %168 {approx = true} : vector<1x128xf32> -> vector<1x128xf32>
      %cst_88 = arith.constant 0.000000e+00 : f32
      %cst_89 = arith.constant 1.000000e+00 : f32
      %170 = vector.broadcast %cst_88 : f32 to vector<1x128xf32>
      %171 = arith.maximumf %170, %169 : vector<1x128xf32>
      %172 = vector.broadcast %cst_89 : f32 to vector<1x128xf32>
      %173 = arith.minimumf %172, %171 : vector<1x128xf32>
      %174 = vector.shape_cast %173 : vector<1x128xf32> to vector<1x1x128xf32>
      %c0_90 = arith.constant 0 : index
      %c0_91 = arith.constant 0 : index
      %c0_92 = arith.constant 0 : index
      %175 = vector.load %arg22[%c0_90, %c0_91, %c0_92] : memref<1x1x128xf32, #tpu.memory_space<vmem>>, vector<1x1x128xf32>
      tpu.vector_store %arg22[%c0_90, %c0_91, %c0_92], %174 {strides = array<i32>} : memref<1x1x128xf32, #tpu.memory_space<vmem>>, vector<1x1x128xf32>,
    } else {
    }
    return
  }
  func.func @transform_0(%arg0: i32, %arg1: i32) -> (i32, i32, i32) {
    %c0_i32 = arith.constant 0 : i32
    %c0_i32_0 = arith.constant 0 : i32
    %c0_i32_1 = arith.constant 0 : i32
    return %arg0, %c0_i32, %c0_i32_0 : i32, i32, i32
  }
  func.func @transform_1(%arg0: i32, %arg1: i32) -> (i32, i32, i32) {
    %c0_i32 = arith.constant 0 : i32
    %c0_i32_0 = arith.constant 0 : i32
    %c0_i32_1 = arith.constant 0 : i32
    return %arg0, %c0_i32, %c0_i32_0 : i32, i32, i32
  }
  func.func @transform_2(%arg0: i32, %arg1: i32) -> (i32, i32) {
    %c0_i32 = arith.constant 0 : i32
    %c0_i32_0 = arith.constant 0 : i32
    %c0_i32_1 = arith.constant 0 : i32
    return %c0_i32, %c0_i32_0 : i32, i32
  }
  func.func @transform_3(%arg0: i32, %arg1: i32) -> (i32, i32) {
    %c0_i32 = arith.constant 0 : i32
    %c0_i32_0 = arith.constant 0 : i32
    %c0_i32_1 = arith.constant 0 : i32
    return %c0_i32, %c0_i32_0 : i32, i32
  }
  func.func @transform_4(%arg0: i32, %arg1: i32) -> (i32, i32, i32) {
    %c0_i32 = arith.constant 0 : i32
    %c0_i32_0 = arith.constant 0 : i32
    %c0_i32_1 = arith.constant 0 : i32
    return %arg1, %c0_i32, %c0_i32_0 : i32, i32, i32
  }
  func.func @transform_5(%arg0: i32, %arg1: i32) -> (i32, i32, i32) {
    %c0_i32 = arith.constant 0 : i32
    %c0_i32_0 = arith.constant 0 : i32
    %c0_i32_1 = arith.constant 0 : i32
    return %arg1, %c0_i32, %c0_i32_0 : i32, i32, i32
  }
  func.func @transform_6(%arg0: i32, %arg1: i32) -> (i32, i32, i32) {
    %c0_i32 = arith.constant 0 : i32
    %c0_i32_0 = arith.constant 0 : i32
    %c0_i32_1 = arith.constant 0 : i32
    return %arg1, %c0_i32, %c0_i32_0 : i32, i32, i32
  }
  func.func @transform_7(%arg0: i32, %arg1: i32) -> (i32, i32, i32) {
    %c0_i32 = arith.constant 0 : i32
    %c0_i32_0 = arith.constant 0 : i32
    %c0_i32_1 = arith.constant 0 : i32
    return %arg1, %c0_i32, %c0_i32_0 : i32, i32, i32
  }
  func.func @transform_8(%arg0: i32, %arg1: i32) -> (i32, i32, i32) {
    %c0_i32 = arith.constant 0 : i32
    %c0_i32_0 = arith.constant 0 : i32
    %c0_i32_1 = arith.constant 0 : i32
    return %arg1, %c0_i32, %c0_i32_0 : i32, i32, i32
  }
  func.func @transform_9(%arg0: i32, %arg1: i32) -> (i32, i32, i32) {
    %c0_i32 = arith.constant 0 : i32
    %c0_i32_0 = arith.constant 0 : i32
    %c0_i32_1 = arith.constant 0 : i32
    return %arg1, %c0_i32, %c0_i32_0 : i32, i32, i32
  }
  func.func @transform_10(%arg0: i32, %arg1: i32) -> (i32, i32, i32) {
    %c0_i32 = arith.constant 0 : i32
    %c0_i32_0 = arith.constant 0 : i32
    %c0_i32_1 = arith.constant 0 : i32
    return %arg1, %c0_i32, %c0_i32_0 : i32, i32, i32
  }
  func.func @transform_11(%arg0: i32, %arg1: i32) -> (i32, i32, i32) {
    %c0_i32 = arith.constant 0 : i32
    %c0_i32_0 = arith.constant 0 : i32
    %c0_i32_1 = arith.constant 0 : i32
    return %arg1, %c0_i32, %c0_i32_0 : i32, i32, i32
  }
  func.func @transform_12(%arg0: i32, %arg1: i32) -> (i32, i32, i32) {
    %c0_i32 = arith.constant 0 : i32
    %c0_i32_0 = arith.constant 0 : i32
    %c0_i32_1 = arith.constant 0 : i32
    return %arg1, %c0_i32, %c0_i32_0 : i32, i32, i32
  }
  func.func @transform_13(%arg0: i32, %arg1: i32) -> (i32, i32, i32) {
    %c0_i32 = arith.constant 0 : i32
    %c0_i32_0 = arith.constant 0 : i32
    %c0_i32_1 = arith.constant 0 : i32
    return %arg1, %c0_i32, %c0_i32_0 : i32, i32, i32
  }
  func.func @transform_14(%arg0: i32, %arg1: i32) -> (i32, i32, i32) {
    %c0_i32 = arith.constant 0 : i32
    %c0_i32_0 = arith.constant 0 : i32
    %c0_i32_1 = arith.constant 0 : i32
    return %arg1, %c0_i32, %c0_i32_0 : i32, i32, i32
  }
  func.func @transform_15(%arg0: i32, %arg1: i32) -> (i32, i32, i32) {
    %c0_i32 = arith.constant 0 : i32
    %c0_i32_0 = arith.constant 0 : i32
    %c0_i32_1 = arith.constant 0 : i32
    return %arg1, %c0_i32, %c0_i32_0 : i32, i32, i32
  }
  func.func @transform_16(%arg0: i32, %arg1: i32) -> (i32, i32) {
    %c0_i32 = arith.constant 0 : i32
    %c0_i32_0 = arith.constant 0 : i32
    %c0_i32_1 = arith.constant 0 : i32
    return %c0_i32, %c0_i32_0 : i32, i32
  }
  func.func @transform_17(%arg0: i32, %arg1: i32) -> (i32, i32) {
    %c0_i32 = arith.constant 0 : i32
    %c0_i32_0 = arith.constant 0 : i32
    %c0_i32_1 = arith.constant 0 : i32
    return %c0_i32, %c0_i32_0 : i32, i32
  }
  func.func @transform_18(%arg0: i32, %arg1: i32) -> (i32, i32) {
    %c0_i32 = arith.constant 0 : i32
    %c0_i32_0 = arith.constant 0 : i32
    %c0_i32_1 = arith.constant 0 : i32
    return %c0_i32, %c0_i32_0 : i32, i32
  }
  func.func @transform_19(%arg0: i32, %arg1: i32) -> (i32, i32) {
    %c0_i32 = arith.constant 0 : i32
    %c0_i32_0 = arith.constant 0 : i32
    %c0_i32_1 = arith.constant 0 : i32
    return %c0_i32, %c0_i32_0 : i32, i32
  }
  func.func @transform_20(%arg0: i32, %arg1: i32) -> (i32, i32, i32) {
    %c0_i32 = arith.constant 0 : i32
    %c0_i32_0 = arith.constant 0 : i32
    %c0_i32_1 = arith.constant 0 : i32
    return %arg0, %c0_i32, %c0_i32_0 : i32, i32, i32
  }
}

</mosaic_0001>

<llo_original>
// kernel: text_model_pred_forward.1
$region0: #{text_model_pred_forward.1}
  #allocation0 [shape = 'u32[]', space=smem, size = 0x4, offset = 0x4, fixed_abs, tag = 'smem constant byte address 0x4 - core index']
  #allocation1 [shape = 'u32[72,128]{1,0:T(1,128)}', space=vmem, size = 0x9000, scoped, tag = 'internal scratch']
  #allocation2 [shape = 'f32[8,128]{1,0:T(8,128)}', space=vmem, size = 0x1000, scoped, tag = 'scratch operand']
  #allocation3 [shape = 'f32[8,128]{1,0:T(8,128)}', space=vmem, size = 0x1000, scoped, tag = 'scratch operand']
  %s0 = inlined_call_operand.vmem [shape: f32[2,1,8], index: 0, kind: input, shape index: {}]
  %s1 = inlined_call_operand.vmem [shape: f32[2,8,128], index: 1, kind: input, shape index: {}]
  %s2 = inlined_call_operand.vmem [shape: f32[1,128], index: 2, kind: input, shape index: {}]
  %s3 = inlined_call_operand.vmem [shape: f32[1,128], index: 3, kind: input, shape index: {}]
  %s4 = inlined_call_operand.hbm [shape: bf16[2,128,384], index: 4, kind: input, shape index: {}]
  %s5 = inlined_call_operand.vmem [shape: f32[2,1,384], index: 5, kind: input, shape index: {}]
  %s6 = inlined_call_operand.vmem [shape: bf16[2,128,128], index: 6, kind: input, shape index: {}]
  %s7 = inlined_call_operand.vmem [shape: f32[2,1,128], index: 7, kind: input, shape index: {}]
  %s8 = inlined_call_operand.vmem [shape: f32[2,1,128], index: 8, kind: input, shape index: {}]
  %s9 = inlined_call_operand.vmem [shape: f32[2,1,128], index: 9, kind: input, shape index: {}]
  %s10 = inlined_call_operand.hbm [shape: bf16[2,128,256], index: 10, kind: input, shape index: {}]
  %s11 = inlined_call_operand.vmem [shape: f32[2,1,256], index: 11, kind: input, shape index: {}]
  %s12 = inlined_call_operand.hbm [shape: bf16[2,256,128], index: 12, kind: input, shape index: {}]
  %s13 = inlined_call_operand.vmem [shape: f32[2,1,128], index: 13, kind: input, shape index: {}]
  %s14 = inlined_call_operand.vmem [shape: f32[2,1,128], index: 14, kind: input, shape index: {}]
  %s15 = inlined_call_operand.vmem [shape: f32[2,1,128], index: 15, kind: input, shape index: {}]
  %s16 = inlined_call_operand.vmem [shape: bf16[128,128], index: 16, kind: input, shape index: {}]
  %s17 = inlined_call_operand.vmem [shape: f32[1,128], index: 17, kind: input, shape index: {}]
  %s18 = inlined_call_operand.vmem [shape: bf16[128,128], index: 18, kind: input, shape index: {}]
  %s19 = inlined_call_operand.vmem [shape: f32[1,128], index: 19, kind: input, shape index: {}]
  %s20 = inlined_call_operand.hbm [shape: f32[2,1,128], index: 20, kind: output, shape index: {}]
  %s21 = sld [smem:[#allocation0]]
  $region133: #{text_model_pred_forward.1} parent=0
    _
  %s23 = ssub.s32 1, %s21
  %s24 = scalar_select 0, %s23, %s21
  $region1: #{text_model_pred_forward.1} parent=0
    #allocation4 [shape = 'u8[196608]{0}', space=vmem, size = 0x30000, scoped, tag = 'input window, operand 4']
    #allocation5 [shape = 's32[2]{0}', space=sflag, size = 0x8, scoped, tag = 'scoped memory for text_model_pred_forward.1']
    #allocation6 [shape = 's32[2]{0}', space=sflag, size = 0x8, scoped, tag = 'scoped memory for text_model_pred_forward.1']
    #allocation7 [shape = 'u8[131072]{0}', space=vmem, size = 0x20000, scoped, tag = 'input window, operand 10']
    #allocation8 [shape = 's32[2]{0}', space=sflag, size = 0x8, scoped, tag = 'scoped memory for text_model_pred_forward.1']
    #allocation9 [shape = 'u8[131072]{0}', space=vmem, size = 0x20000, scoped, tag = 'input window, operand 12']
    #allocation10 [shape = 'u8[1024]{0}', space=vmem, size = 0x400, scoped, tag = 'output window, operand 0']
    %25 = vsyncpa [#allocation5], 0
    %s26 = scalar_lea.sflag [#allocation5], 1
    %27 = vsyncpa %s26, 0
    %28 = vsyncpa [#allocation8], 0
    %s29 = scalar_lea.sflag [#allocation8], 1
    %30 = vsyncpa %s29, 0
    %31 = vsyncpa [#allocation6], 0
    %s32 = scalar_lea.sflag [#allocation6], 1
    %33 = vsyncpa %s32, 0
    loop: start=0, step=1, limit=6
    $region2: #{text_model_pred_forward.1} parent=1 // loop_pre_header
      _
    $region3: #{text_model_pred_forward.1} parent=1 // loop_header
      %s35 = sphi 0, %s39
      %p36 = scmp.ge.s32.totalorder %s35, 6
      %s42 = sphi 0, %s54
      %s43 = sphi 0, %s50
      %s44 = sphi 0, %s42
      %s45 = sphi 0, %s43
      %s46 = sphi 0, %s44
      %s47 = sphi 0, %s45
      %s57 = sphi 0, %s59
      %s60 = sphi 0, %s57
      %s61 = sphi 0, %s60
      %s77 = sphi 0, %s61
      %s83 = sphi 0, %s85
      %s86 = sphi 0, %s83
      %s87 = sphi 0, %s86
      %s103 = sphi 0, %s87
      %s107 = sphi 0, %s107
      %s109 = sphi 0, %s107
      %s110 = sphi 0, %s109
      %s124 = sphi 0, %s110
      %s128 = sphi 0, %s128
      %s130 = sphi 0, %s128
      %s131 = sphi 0, %s130
      %s145 = sphi 0, %s131
      %s151 = sphi 0, %s153
      %s154 = sphi 0, %s151
      %s155 = sphi 0, %s154
      %s171 = sphi 0, %s155
      %s177 = sphi 0, %s179
      %s180 = sphi 0, %s177
      %s181 = sphi 0, %s180
      %s197 = sphi 0, %s181
      %s203 = sphi 0, %s205
      %s206 = sphi 0, %s203
      %s207 = sphi 0, %s206
      %s223 = sphi 0, %s207
      %s229 = sphi 0, %s231
      %s232 = sphi 0, %s229
      %s233 = sphi 0, %s232
      %s249 = sphi 0, %s233
      %s255 = sphi 0, %s257
      %s258 = sphi 0, %s255
      %s259 = sphi 0, %s258
      %s275 = sphi 0, %s259
      %s281 = sphi 0, %s283
      %s284 = sphi 0, %s281
      %s285 = sphi 0, %s284
      %s301 = sphi 0, %s285
      %s307 = sphi 0, %s309
      %s310 = sphi 0, %s307
      %s311 = sphi 0, %s310
      %s327 = sphi 0, %s311
      %s333 = sphi 0, %s335
      %s336 = sphi 0, %s333
      %s337 = sphi 0, %s336
      %s353 = sphi 0, %s337
      %s359 = sphi 0, %s361
      %s362 = sphi 0, %s359
      %s363 = sphi 0, %s362
      %s379 = sphi 0, %s363
      %s385 = sphi 0, %s387
      %s388 = sphi 0, %s385
      %s389 = sphi 0, %s388
      %s405 = sphi 0, %s389
      %s411 = sphi 0, %s413
      %s414 = sphi 0, %s411
      %s415 = sphi 0, %s414
      %s431 = sphi 0, %s415
      %s437 = sphi 0, %s439
      %s440 = sphi 0, %s437
      %s441 = sphi 0, %s440
      %s457 = sphi 0, %s441
      %s461 = sphi 0, %s461
      %s463 = sphi 0, %s461
      %s464 = sphi 0, %s463
      %s478 = sphi 0, %s464
      %s482 = sphi 0, %s482
      %s484 = sphi 0, %s482
      %s485 = sphi 0, %s484
      %s499 = sphi 0, %s485
      %s503 = sphi 0, %s503
      %s505 = sphi 0, %s503
      %s506 = sphi 0, %s505
      %s520 = sphi 0, %s506
      %s524 = sphi 0, %s524
      %s526 = sphi 0, %s524
      %s527 = sphi 0, %s526
      %s541 = sphi 0, %s527
      %s547 = sphi 0, %s549
      %s550 = sphi 0, %s547
      %s551 = sphi 0, %s550
      %s567 = sphi 0, %s551
    $region4: #{text_model_pred_forward.1} parent=1 // loop_header_branch
      %38 = sbr.rel (%p36) target = $region8
    $region5: #{text_model_pred_forward.1} parent=1 // loop_body
      %s40 = ssub.s32 %s35, 1
      %s41 = ssub.s32 %s35, 2
      %s48 = sadd.s32 1, %s43
      %p49 = scmp.ge.s32.totalorder %s48, 2
      %s50 = scalar_select %p49, 0, %s48
      %s51 = sadd.s32 1, %s42
      %s52 = scalar_select %p49, %s51, %s42
      %p53 = scmp.ge.s32.totalorder %s52, 2
      %s54 = scalar_select %p53, 0, %s52
      %s55 = ssub.s32 %s42, %s54
      %p56 = scmp.eq.s32.totalorder %s55, 0
      %s58 = sadd.s32 %s57, 1
      %s59 = scalar_select %p56, %s57, %s58
      %p62 = pneg %p56
      %p63 = scmp.eq.s32.totalorder %s35, 3
      %p64 = por %p62, %p63
      %p65 = scmp.ne.s32.totalorder %s57, %s60
      %p66 = scmp.eq.s32.totalorder %s35, 0
      %p67 = por %p65, %p66
      %p68 = scmp.ne.s32.totalorder %s57, %s60
      %p69 = scmp.eq.s32.totalorder %s40, 3
      %p70 = por %p68, %p69
      %p71 = scmp.ne.s32.totalorder %s60, %s61
      %p72 = scmp.eq.s32.totalorder %s40, 0
      %p73 = por %p71, %p72
      %p74 = scmp.ne.s32.totalorder %s60, %s61
      %p75 = scmp.eq.s32.totalorder %s41, 3
      %p76 = por %p74, %p75
      %p78 = scmp.ne.s32.totalorder %s61, %s77
      %p79 = scmp.eq.s32.totalorder %s41, 0
      %p80 = por %p78, %p79
      %s81 = ssub.s32 %s42, %s54
      %p82 = scmp.eq.s32.totalorder %s81, 0
      %s84 = sadd.s32 %s83, 1
      %s85 = scalar_select %p82, %s83, %s84
      %p88 = pneg %p82
      %p89 = scmp.eq.s32.totalorder %s35, 3
      %p90 = por %p88, %p89
      %p91 = scmp.ne.s32.totalorder %s83, %s86
      %p92 = scmp.eq.s32.totalorder %s35, 0
      %p93 = por %p91, %p92
      %p94 = scmp.ne.s32.totalorder %s83, %s86
      %p95 = scmp.eq.s32.totalorder %s40, 3
      %p96 = por %p94, %p95
      %p97 = scmp.ne.s32.totalorder %s86, %s87
      %p98 = scmp.eq.s32.totalorder %s40, 0
      %p99 = por %p97, %p98
      %p100 = scmp.ne.s32.totalorder %s86, %s87
      %p101 = scmp.eq.s32.totalorder %s41, 3
      %p102 = por %p100, %p101
      %p104 = scmp.ne.s32.totalorder %s87, %s103
      %p105 = scmp.eq.s32.totalorder %s41, 0
      %p106 = por %p104, %p105
      %s108 = sadd.s32 %s107, 1
      %p111 = scmp.eq.s32.totalorder %s35, 3
      %p112 = scmp.ne.s32.totalorder %s107, %s109
      %p113 = scmp.eq.s32.totalorder %s35, 0
      %p114 = por %p112, %p113
      %p115 = scmp.ne.s32.totalorder %s107, %s109
      %p116 = scmp.eq.s32.totalorder %s40, 3
      %p117 = por %p115, %p116
      %p118 = scmp.ne.s32.totalorder %s109, %s110
      %p119 = scmp.eq.s32.totalorder %s40, 0
      %p120 = por %p118, %p119
      %p121 = scmp.ne.s32.totalorder %s109, %s110
      %p122 = scmp.eq.s32.totalorder %s41, 3
      %p123 = por %p121, %p122
      %p125 = scmp.ne.s32.totalorder %s110, %s124
      %p126 = scmp.eq.s32.totalorder %s41, 0
      %p127 = por %p125, %p126
      %s129 = sadd.s32 %s128, 1
      %p132 = scmp.eq.s32.totalorder %s35, 3
      %p133 = scmp.ne.s32.totalorder %s128, %s130
      %p134 = scmp.eq.s32.totalorder %s35, 0
      %p135 = por %p133, %p134
      %p136 = scmp.ne.s32.totalorder %s128, %s130
      %p137 = scmp.eq.s32.totalorder %s40, 3
      %p138 = por %p136, %p137
      %p139 = scmp.ne.s32.totalorder %s130, %s131
      %p140 = scmp.eq.s32.totalorder %s40, 0
      %p141 = por %p139, %p140
      %p142 = scmp.ne.s32.totalorder %s130, %s131
      %p143 = scmp.eq.s32.totalorder %s41, 3
      %p144 = por %p142, %p143
      %p146 = scmp.ne.s32.totalorder %s131, %s145
      %p147 = scmp.eq.s32.totalorder %s41, 0
      %p148 = por %p146, %p147
      %s149 = ssub.s32 %s43, %s50
      %p150 = scmp.eq.s32.totalorder %s149, 0
      %s152 = sadd.s32 %s151, 1
      %s153 = scalar_select %p150, %s151, %s152
      %p156 = pneg %p150
      %p157 = scmp.eq.s32.totalorder %s35, 3
      %p158 = por %p156, %p157
      %p159 = scmp.ne.s32.totalorder %s151, %s154
      %p160 = scmp.eq.s32.totalorder %s35, 0
      %p161 = por %p159, %p160
      %p162 = scmp.ne.s32.totalorder %s151, %s154
      %p163 = scmp.eq.s32.totalorder %s40, 3
      %p164 = por %p162, %p163
      %p165 = scmp.ne.s32.totalorder %s154, %s155
      %p166 = scmp.eq.s32.totalorder %s40, 0
      %p167 = por %p165, %p166
      %p168 = scmp.ne.s32.totalorder %s154, %s155
      %p169 = scmp.eq.s32.totalorder %s41, 3
      %p170 = por %p168, %p169
      %p172 = scmp.ne.s32.totalorder %s155, %s171
      %p173 = scmp.eq.s32.totalorder %s41, 0
      %p174 = por %p172, %p173
      %s175 = ssub.s32 %s43, %s50
      %p176 = scmp.eq.s32.totalorder %s175, 0
      %s178 = sadd.s32 %s177, 1
      %s179 = scalar_select %p176, %s177, %s178
      %p182 = pneg %p176
      %p183 = scmp.eq.s32.totalorder %s35, 3
      %p184 = por %p182, %p183
      %p185 = scmp.ne.s32.totalorder %s177, %s180
      %p186 = scmp.eq.s32.totalorder %s35, 0
      %p187 = por %p185, %p186
      %p188 = scmp.ne.s32.totalorder %s177, %s180
      %p189 = scmp.eq.s32.totalorder %s40, 3
      %p190 = por %p188, %p189
      %p191 = scmp.ne.s32.totalorder %s180, %s181
      %p192 = scmp.eq.s32.totalorder %s40, 0
      %p193 = por %p191, %p192
      %p194 = scmp.ne.s32.totalorder %s180, %s181
      %p195 = scmp.eq.s32.totalorder %s41, 3
      %p196 = por %p194, %p195
      %p198 = scmp.ne.s32.totalorder %s181, %s197
      %p199 = scmp.eq.s32.totalorder %s41, 0
      %p200 = por %p198, %p199
      %s201 = ssub.s32 %s43, %s50
      %p202 = scmp.eq.s32.totalorder %s201, 0
      %s204 = sadd.s32 %s203, 1
      %s205 = scalar_select %p202, %s203, %s204
      %p208 = pneg %p202
      %p209 = scmp.eq.s32.totalorder %s35, 3
      %p210 = por %p208, %p209
      %p211 = scmp.ne.s32.totalorder %s203, %s206
      %p212 = scmp.eq.s32.totalorder %s35, 0
      %p213 = por %p211, %p212
      %p214 = scmp.ne.s32.totalorder %s203, %s206
      %p215 = scmp.eq.s32.totalorder %s40, 3
      %p216 = por %p214, %p215
      %p217 = scmp.ne.s32.totalorder %s206, %s207
      %p218 = scmp.eq.s32.totalorder %s40, 0
      %p219 = por %p217, %p218
      %p220 = scmp.ne.s32.totalorder %s206, %s207
      %p221 = scmp.eq.s32.totalorder %s41, 3
      %p222 = por %p220, %p221
      %p224 = scmp.ne.s32.totalorder %s207, %s223
      %p225 = scmp.eq.s32.totalorder %s41, 0
      %p226 = por %p224, %p225
      %s227 = ssub.s32 %s43, %s50
      %p228 = scmp.eq.s32.totalorder %s227, 0
      %s230 = sadd.s32 %s229, 1
      %s231 = scalar_select %p228, %s229, %s230
      %p234 = pneg %p228
      %p235 = scmp.eq.s32.totalorder %s35, 3
      %p236 = por %p234, %p235
      %p237 = scmp.ne.s32.totalorder %s229, %s232
      %p238 = scmp.eq.s32.totalorder %s35, 0
      %p239 = por %p237, %p238
      %p240 = scmp.ne.s32.totalorder %s229, %s232
      %p241 = scmp.eq.s32.totalorder %s40, 3
      %p242 = por %p240, %p241
      %p243 = scmp.ne.s32.totalorder %s232, %s233
      %p244 = scmp.eq.s32.totalorder %s40, 0
      %p245 = por %p243, %p244
      %p246 = scmp.ne.s32.totalorder %s232, %s233
      %p247 = scmp.eq.s32.totalorder %s41, 3
      %p248 = por %p246, %p247
      %p250 = scmp.ne.s32.totalorder %s233, %s249
      %p251 = scmp.eq.s32.totalorder %s41, 0
      %p252 = por %p250, %p251
      %s253 = ssub.s32 %s43, %s50
      %p254 = scmp.eq.s32.totalorder %s253, 0
      %s256 = sadd.s32 %s255, 1
      %s257 = scalar_select %p254, %s255, %s256
      %p260 = pneg %p254
      %p261 = scmp.eq.s32.totalorder %s35, 3
      %p262 = por %p260, %p261
      %p263 = scmp.ne.s32.totalorder %s255, %s258
      %p264 = scmp.eq.s32.totalorder %s35, 0
      %p265 = por %p263, %p264
      %p266 = scmp.ne.s32.totalorder %s255, %s258
      %p267 = scmp.eq.s32.totalorder %s40, 3
      %p268 = por %p266, %p267
      %p269 = scmp.ne.s32.totalorder %s258, %s259
      %p270 = scmp.eq.s32.totalorder %s40, 0
      %p271 = por %p269, %p270
      %p272 = scmp.ne.s32.totalorder %s258, %s259
      %p273 = scmp.eq.s32.totalorder %s41, 3
      %p274 = por %p272, %p273
      %p276 = scmp.ne.s32.totalorder %s259, %s275
      %p277 = scmp.eq.s32.totalorder %s41, 0
      %p278 = por %p276, %p277
      %s279 = ssub.s32 %s43, %s50
      %p280 = scmp.eq.s32.totalorder %s279, 0
      %s282 = sadd.s32 %s281, 1
      %s283 = scalar_select %p280, %s281, %s282
      %p286 = pneg %p280
      %p287 = scmp.eq.s32.totalorder %s35, 3
      %p288 = por %p286, %p287
      %p289 = scmp.ne.s32.totalorder %s281, %s284
      %p290 = scmp.eq.s32.totalorder %s35, 0
      %p291 = por %p289, %p290
      %p292 = scmp.ne.s32.totalorder %s281, %s284
      %p293 = scmp.eq.s32.totalorder %s40, 3
      %p294 = por %p292, %p293
      %p295 = scmp.ne.s32.totalorder %s284, %s285
      %p296 = scmp.eq.s32.totalorder %s40, 0
      %p297 = por %p295, %p296
      %p298 = scmp.ne.s32.totalorder %s284, %s285
      %p299 = scmp.eq.s32.totalorder %s41, 3
      %p300 = por %p298, %p299
      %p302 = scmp.ne.s32.totalorder %s285, %s301
      %p303 = scmp.eq.s32.totalorder %s41, 0
      %p304 = por %p302, %p303
      %s305 = ssub.s32 %s43, %s50
      %p306 = scmp.eq.s32.totalorder %s305, 0
      %s308 = sadd.s32 %s307, 1
      %s309 = scalar_select %p306, %s307, %s308
      %p312 = pneg %p306
      %p313 = scmp.eq.s32.totalorder %s35, 3
      %p314 = por %p312, %p313
      %p315 = scmp.ne.s32.totalorder %s307, %s310
      %p316 = scmp.eq.s32.totalorder %s35, 0
      %p317 = por %p315, %p316
      %p318 = scmp.ne.s32.totalorder %s307, %s310
      %p319 = scmp.eq.s32.totalorder %s40, 3
      %p320 = por %p318, %p319
      %p321 = scmp.ne.s32.totalorder %s310, %s311
      %p322 = scmp.eq.s32.totalorder %s40, 0
      %p323 = por %p321, %p322
      %p324 = scmp.ne.s32.totalorder %s310, %s311
      %p325 = scmp.eq.s32.totalorder %s41, 3
      %p326 = por %p324, %p325
      %p328 = scmp.ne.s32.totalorder %s311, %s327
      %p329 = scmp.eq.s32.totalorder %s41, 0
      %p330 = por %p328, %p329
      %s331 = ssub.s32 %s43, %s50
      %p332 = scmp.eq.s32.totalorder %s331, 0
      %s334 = sadd.s32 %s333, 1
      %s335 = scalar_select %p332, %s333, %s334
      %p338 = pneg %p332
      %p339 = scmp.eq.s32.totalorder %s35, 3
      %p340 = por %p338, %p339
      %p341 = scmp.ne.s32.totalorder %s333, %s336
      %p342 = scmp.eq.s32.totalorder %s35, 0
      %p343 = por %p341, %p342
      %p344 = scmp.ne.s32.totalorder %s333, %s336
      %p345 = scmp.eq.s32.totalorder %s40, 3
      %p346 = por %p344, %p345
      %p347 = scmp.ne.s32.totalorder %s336, %s337
      %p348 = scmp.eq.s32.totalorder %s40, 0
      %p349 = por %p347, %p348
      %p350 = scmp.ne.s32.totalorder %s336, %s337
      %p351 = scmp.eq.s32.totalorder %s41, 3
      %p352 = por %p350, %p351
      %p354 = scmp.ne.s32.totalorder %s337, %s353
      %p355 = scmp.eq.s32.totalorder %s41, 0
      %p356 = por %p354, %p355
      %s357 = ssub.s32 %s43, %s50
      %p358 = scmp.eq.s32.totalorder %s357, 0
      %s360 = sadd.s32 %s359, 1
      %s361 = scalar_select %p358, %s359, %s360
      %p364 = pneg %p358
      %p365 = scmp.eq.s32.totalorder %s35, 3
      %p366 = por %p364, %p365
      %p367 = scmp.ne.s32.totalorder %s359, %s362
      %p368 = scmp.eq.s32.totalorder %s35, 0
      %p369 = por %p367, %p368
      %p370 = scmp.ne.s32.totalorder %s359, %s362
      %p371 = scmp.eq.s32.totalorder %s40, 3
      %p372 = por %p370, %p371
      %p373 = scmp.ne.s32.totalorder %s362, %s363
      %p374 = scmp.eq.s32.totalorder %s40, 0
      %p375 = por %p373, %p374
      %p376 = scmp.ne.s32.totalorder %s362, %s363
      %p377 = scmp.eq.s32.totalorder %s41, 3
      %p378 = por %p376, %p377
      %p380 = scmp.ne.s32.totalorder %s363, %s379
      %p381 = scmp.eq.s32.totalorder %s41, 0
      %p382 = por %p380, %p381
      %s383 = ssub.s32 %s43, %s50
      %p384 = scmp.eq.s32.totalorder %s383, 0
      %s386 = sadd.s32 %s385, 1
      %s387 = scalar_select %p384, %s385, %s386
      %p390 = pneg %p384
      %p391 = scmp.eq.s32.totalorder %s35, 3
      %p392 = por %p390, %p391
      %p393 = scmp.ne.s32.totalorder %s385, %s388
      %p394 = scmp.eq.s32.totalorder %s35, 0
      %p395 = por %p393, %p394
      %p396 = scmp.ne.s32.totalorder %s385, %s388
      %p397 = scmp.eq.s32.totalorder %s40, 3
      %p398 = por %p396, %p397
      %p399 = scmp.ne.s32.totalorder %s388, %s389
      %p400 = scmp.eq.s32.totalorder %s40, 0
      %p401 = por %p399, %p400
      %p402 = scmp.ne.s32.totalorder %s388, %s389
      %p403 = scmp.eq.s32.totalorder %s41, 3
      %p404 = por %p402, %p403
      %p406 = scmp.ne.s32.totalorder %s389, %s405
      %p407 = scmp.eq.s32.totalorder %s41, 0
      %p408 = por %p406, %p407
      %s409 = ssub.s32 %s43, %s50
      %p410 = scmp.eq.s32.totalorder %s409, 0
      %s412 = sadd.s32 %s411, 1
      %s413 = scalar_select %p410, %s411, %s412
      %p416 = pneg %p410
      %p417 = scmp.eq.s32.totalorder %s35, 3
      %p418 = por %p416, %p417
      %p419 = scmp.ne.s32.totalorder %s411, %s414
      %p420 = scmp.eq.s32.totalorder %s35, 0
      %p421 = por %p419, %p420
      %p422 = scmp.ne.s32.totalorder %s411, %s414
      %p423 = scmp.eq.s32.totalorder %s40, 3
      %p424 = por %p422, %p423
      %p425 = scmp.ne.s32.totalorder %s414, %s415
      %p426 = scmp.eq.s32.totalorder %s40, 0
      %p427 = por %p425, %p426
      %p428 = scmp.ne.s32.totalorder %s414, %s415
      %p429 = scmp.eq.s32.totalorder %s41, 3
      %p430 = por %p428, %p429
      %p432 = scmp.ne.s32.totalorder %s415, %s431
      %p433 = scmp.eq.s32.totalorder %s41, 0
      %p434 = por %p432, %p433
      %s435 = ssub.s32 %s43, %s50
      %p436 = scmp.eq.s32.totalorder %s435, 0
      %s438 = sadd.s32 %s437, 1
      %s439 = scalar_select %p436, %s437, %s438
      %p442 = pneg %p436
      %p443 = scmp.eq.s32.totalorder %s35, 3
      %p444 = por %p442, %p443
      %p445 = scmp.ne.s32.totalorder %s437, %s440
      %p446 = scmp.eq.s32.totalorder %s35, 0
      %p447 = por %p445, %p446
      %p448 = scmp.ne.s32.totalorder %s437, %s440
      %p449 = scmp.eq.s32.totalorder %s40, 3
      %p450 = por %p448, %p449
      %p451 = scmp.ne.s32.totalorder %s440, %s441
      %p452 = scmp.eq.s32.totalorder %s40, 0
      %p453 = por %p451, %p452
      %p454 = scmp.ne.s32.totalorder %s440, %s441
      %p455 = scmp.eq.s32.totalorder %s41, 3
      %p456 = por %p454, %p455
      %p458 = scmp.ne.s32.totalorder %s441, %s457
      %p459 = scmp.eq.s32.totalorder %s41, 0
      %p460 = por %p458, %p459
      %s462 = sadd.s32 %s461, 1
      %p465 = scmp.eq.s32.totalorder %s35, 3
      %p466 = scmp.ne.s32.totalorder %s461, %s463
      %p467 = scmp.eq.s32.totalorder %s35, 0
      %p468 = por %p466, %p467
      %p469 = scmp.ne.s32.totalorder %s461, %s463
      %p470 = scmp.eq.s32.totalorder %s40, 3
      %p471 = por %p469, %p470
      %p472 = scmp.ne.s32.totalorder %s463, %s464
      %p473 = scmp.eq.s32.totalorder %s40, 0
      %p474 = por %p472, %p473
      %p475 = scmp.ne.s32.totalorder %s463, %s464
      %p476 = scmp.eq.s32.totalorder %s41, 3
      %p477 = por %p475, %p476
      %p479 = scmp.ne.s32.totalorder %s464, %s478
      %p480 = scmp.eq.s32.totalorder %s41, 0
      %p481 = por %p479, %p480
      %s483 = sadd.s32 %s482, 1
      %p486 = scmp.eq.s32.totalorder %s35, 3
      %p487 = scmp.ne.s32.totalorder %s482, %s484
      %p488 = scmp.eq.s32.totalorder %s35, 0
      %p489 = por %p487, %p488
      %p490 = scmp.ne.s32.totalorder %s482, %s484
      %p491 = scmp.eq.s32.totalorder %s40, 3
      %p492 = por %p490, %p491
      %p493 = scmp.ne.s32.totalorder %s484, %s485
      %p494 = scmp.eq.s32.totalorder %s40, 0
      %p495 = por %p493, %p494
      %p496 = scmp.ne.s32.totalorder %s484, %s485
      %p497 = scmp.eq.s32.totalorder %s41, 3
      %p498 = por %p496, %p497
      %p500 = scmp.ne.s32.totalorder %s485, %s499
      %p501 = scmp.eq.s32.totalorder %s41, 0
      %p502 = por %p500, %p501
      %s504 = sadd.s32 %s503, 1
      %p507 = scmp.eq.s32.totalorder %s35, 3
      %p508 = scmp.ne.s32.totalorder %s503, %s505
      %p509 = scmp.eq.s32.totalorder %s35, 0
      %p510 = por %p508, %p509
      %p511 = scmp.ne.s32.totalorder %s503, %s505
      %p512 = scmp.eq.s32.totalorder %s40, 3
      %p513 = por %p511, %p512
      %p514 = scmp.ne.s32.totalorder %s505, %s506
      %p515 = scmp.eq.s32.totalorder %s40, 0
      %p516 = por %p514, %p515
      %p517 = scmp.ne.s32.totalorder %s505, %s506
      %p518 = scmp.eq.s32.totalorder %s41, 3
      %p519 = por %p517, %p518
      %p521 = scmp.ne.s32.totalorder %s506, %s520
      %p522 = scmp.eq.s32.totalorder %s41, 0
      %p523 = por %p521, %p522
      %s525 = sadd.s32 %s524, 1
      %p528 = scmp.eq.s32.totalorder %s35, 3
      %p529 = scmp.ne.s32.totalorder %s524, %s526
      %p530 = scmp.eq.s32.totalorder %s35, 0
      %p531 = por %p529, %p530
      %p532 = scmp.ne.s32.totalorder %s524, %s526
      %p533 = scmp.eq.s32.totalorder %s40, 3
      %p534 = por %p532, %p533
      %p535 = scmp.ne.s32.totalorder %s526, %s527
      %p536 = scmp.eq.s32.totalorder %s40, 0
      %p537 = por %p535, %p536
      %p538 = scmp.ne.s32.totalorder %s526, %s527
      %p539 = scmp.eq.s32.totalorder %s41, 3
      %p540 = por %p538, %p539
      %p542 = scmp.ne.s32.totalorder %s527, %s541
      %p543 = scmp.eq.s32.totalorder %s41, 0
      %p544 = por %p542, %p543
      %s545 = ssub.s32 %s42, %s54
      %p546 = scmp.eq.s32.totalorder %s545, 0
      %s548 = sadd.s32 %s547, 1
      %s549 = scalar_select %p546, %s547, %s548
      %p552 = pneg %p546
      %p553 = scmp.eq.s32.totalorder %s35, 3
      %p554 = por %p552, %p553
      %p555 = scmp.ne.s32.totalorder %s547, %s550
      %p556 = scmp.eq.s32.totalorder %s35, 0
      %p557 = por %p555, %p556
      %p558 = scmp.ne.s32.totalorder %s547, %s550
      %p559 = scmp.eq.s32.totalorder %s40, 3
      %p560 = por %p558, %p559
      %p561 = scmp.ne.s32.totalorder %s550, %s551
      %p562 = scmp.eq.s32.totalorder %s40, 0
      %p563 = por %p561, %p562
      %p564 = scmp.ne.s32.totalorder %s550, %s551
      %p565 = scmp.eq.s32.totalorder %s41, 3
      %p566 = por %p564, %p565
      %p568 = scmp.ne.s32.totalorder %s551, %s567
      %p569 = scmp.eq.s32.totalorder %s41, 0
      %p570 = por %p568, %p569
      %p571 = scmp.le.s32.totalorder 1, %s35
      %p572 = scmp.lt.s32.totalorder %s35, 5
      %p573 = pnand %p571, %p572
      %p574 = pneg %p573
      // Predicated region
      $region9: #{text_model_pred_forward.1} parent=5 // pred_check
        _
      $region10: #{text_model_pred_forward.1} parent=5 // pred_check_branch
        %576 = sbr.rel (%p573) target = $region12
      $region11: #{text_model_pred_forward.1} parent=5 // pred_region
        %s577 = ssub.s32 %s35, 1
        // Predicated region
        $region13: #{text_model_pred_forward.1} parent=11 // pred_check
          %p578 = pneg %p120
        $region14: #{text_model_pred_forward.1} parent=11 // pred_check_branch
          %580 = sbr.rel (%p578) target = $region16
        $region15: #{text_model_pred_forward.1} parent=11 // pred_region
          _
        $region16: #{text_model_pred_forward.1} parent=11 // pred_fallthru
          _
        // Predicated region
        $region17: #{text_model_pred_forward.1} parent=11 // pred_check
          %p581 = pneg %p141
        $region18: #{text_model_pred_forward.1} parent=11 // pred_check_branch
          %583 = sbr.rel (%p581) target = $region20
        $region19: #{text_model_pred_forward.1} parent=11 // pred_region
          _
        $region20: #{text_model_pred_forward.1} parent=11 // pred_fallthru
          _
        // Predicated region
        $region21: #{text_model_pred_forward.1} parent=11 // pred_check
          %p584 = pneg %p474
        $region22: #{text_model_pred_forward.1} parent=11 // pred_check_branch
          %586 = sbr.rel (%p584) target = $region24
        $region23: #{text_model_pred_forward.1} parent=11 // pred_region
          _
        $region24: #{text_model_pred_forward.1} parent=11 // pred_fallthru
          _
        // Predicated region
        $region25: #{text_model_pred_forward.1} parent=11 // pred_check
          %p587 = pneg %p495
        $region26: #{text_model_pred_forward.1} parent=11 // pred_check_branch
          %589 = sbr.rel (%p587) target = $region28
        $region27: #{text_model_pred_forward.1} parent=11 // pred_region
          _
        $region28: #{text_model_pred_forward.1} parent=11 // pred_fallthru
          _
        // Predicated region
        $region29: #{text_model_pred_forward.1} parent=11 // pred_check
          %p590 = pneg %p516
        $region30: #{text_model_pred_forward.1} parent=11 // pred_check_branch
          %592 = sbr.rel (%p590) target = $region32
        $region31: #{text_model_pred_forward.1} parent=11 // pred_region
          _
        $region32: #{text_model_pred_forward.1} parent=11 // pred_fallthru
          _
        // Predicated region
        $region33: #{text_model_pred_forward.1} parent=11 // pred_check
          %p593 = pneg %p537
        $region34: #{text_model_pred_forward.1} parent=11 // pred_check_branch
          %595 = sbr.rel (%p593) target = $region36
        $region35: #{text_model_pred_forward.1} parent=11 // pred_region
          _
        $region36: #{text_model_pred_forward.1} parent=11 // pred_fallthru
          _
      $region12: #{text_model_pred_forward.1} parent=5 // pred_fallthru
        _
      %p596 = scmp.lt.s32.totalorder %s35, 4
      // Predicated region
      $region37: #{text_model_pred_forward.1} parent=5 // pred_check
        %p597 = pneg %p596
      $region38: #{text_model_pred_forward.1} parent=5 // pred_check_branch
        %599 = sbr.rel (%p597) target = $region40
      $region39: #{text_model_pred_forward.1} parent=5 // pred_region
        // Predicated region
        $region41: #{text_model_pred_forward.1} parent=39 // pred_check
          %p600 = pneg %p67
        $region42: #{text_model_pred_forward.1} parent=39 // pred_check_branch
          %602 = sbr.rel (%p600) target = $region44
        $region43: #{text_model_pred_forward.1} parent=39 // pred_region
          %p603 = scmp.lt.s32.totalorder %s42, 1
          %s604 = scalar_select %p603, %s42, 1
          %s605 = scalar_lea.vmem %s0, %s604
        $region44: #{text_model_pred_forward.1} parent=39 // pred_fallthru
          _
        // Predicated region
        $region45: #{text_model_pred_forward.1} parent=39 // pred_check
          %p606 = pneg %p93
        $region46: #{text_model_pred_forward.1} parent=39 // pred_check_branch
          %608 = sbr.rel (%p606) target = $region48
        $region47: #{text_model_pred_forward.1} parent=39 // pred_region
          %p609 = scmp.lt.s32.totalorder %s42, 1
          %s610 = scalar_select %p609, %s42, 1
          %s611 = smul.addr %s610, 8
          %s612 = scalar_lea.vmem %s1, %s611
        $region48: #{text_model_pred_forward.1} parent=39 // pred_fallthru
          _
        // Predicated region
        $region49: #{text_model_pred_forward.1} parent=39 // pred_check
          %p613 = pneg %p161
        $region50: #{text_model_pred_forward.1} parent=39 // pred_check_branch
          %615 = sbr.rel (%p613) target = $region52
        $region51: #{text_model_pred_forward.1} parent=39 // pred_region
          %s616 = sand.u32 %s151, 1
          %s617 = scalar_lea.sflag [#allocation5], %s616
          %s618 = sand.u32 %s151, 1
          %s619 = smul.addr %s618, 192
          %s620 = scalar_lea.vmem [#allocation4], %s619
          %622 = vsyncadd %s617, 0
          %s623 = smul.addr %s43, 48
          %s624 = smul.addr %s623, 4
          %s625 = scalar_lea.hbm %s4, %s624
          %s626 = sshll.u32 %s625, 4
          %s627 = int_to_ptr.hbm [resolvable:$true] %s626
          %s628 = sshll.u32 %s620, 4
          %s629 = int_to_ptr.vmem [resolvable:$true] %s628
          %634 = dma.hbm_to_vmem [thread:$0]  %s627, 3072, %s629, %s617, 192, 192, 12
        $region52: #{text_model_pred_forward.1} parent=39 // pred_fallthru
          _
        // Predicated region
        $region53: #{text_model_pred_forward.1} parent=39 // pred_check
          %p635 = pneg %p187
        $region54: #{text_model_pred_forward.1} parent=39 // pred_check_branch
          %637 = sbr.rel (%p635) target = $region56
        $region55: #{text_model_pred_forward.1} parent=39 // pred_region
          %p638 = scmp.lt.s32.totalorder %s43, 1
          %s639 = scalar_select %p638, %s43, 1
          %s640 = smul.addr %s639, 3
          %s641 = scalar_lea.vmem %s5, %s640
        $region56: #{text_model_pred_forward.1} parent=39 // pred_fallthru
          _
        // Predicated region
        $region57: #{text_model_pred_forward.1} parent=39 // pred_check
          %p642 = pneg %p213
        $region58: #{text_model_pred_forward.1} parent=39 // pred_check_branch
          %644 = sbr.rel (%p642) target = $region60
        $region59: #{text_model_pred_forward.1} parent=39 // pred_region
          %p645 = scmp.lt.s32.totalorder %s43, 1
          %s646 = scalar_select %p645, %s43, 1
          %s647 = smul.addr %s646, 16
          %s648 = smul.addr %s647, 4
          %s649 = scalar_lea.vmem %s6, %s648
        $region60: #{text_model_pred_forward.1} parent=39 // pred_fallthru
          _
        // Predicated region
        $region61: #{text_model_pred_forward.1} parent=39 // pred_check
          %p650 = pneg %p239
        $region62: #{text_model_pred_forward.1} parent=39 // pred_check_branch
          %652 = sbr.rel (%p650) target = $region64
        $region63: #{text_model_pred_forward.1} parent=39 // pred_region
          %p653 = scmp.lt.s32.totalorder %s43, 1
          %s654 = scalar_select %p653, %s43, 1
          %s655 = scalar_lea.vmem %s7, %s654
        $region64: #{text_model_pred_forward.1} parent=39 // pred_fallthru
          _
        // Predicated region
        $region65: #{text_model_pred_forward.1} parent=39 // pred_check
          %p656 = pneg %p265
        $region66: #{text_model_pred_forward.1} parent=39 // pred_check_branch
          %658 = sbr.rel (%p656) target = $region68
        $region67: #{text_model_pred_forward.1} parent=39 // pred_region
          %p659 = scmp.lt.s32.totalorder %s43, 1
          %s660 = scalar_select %p659, %s43, 1
          %s661 = scalar_lea.vmem %s8, %s660
        $region68: #{text_model_pred_forward.1} parent=39 // pred_fallthru
          _
        // Predicated region
        $region69: #{text_model_pred_forward.1} parent=39 // pred_check
          %p662 = pneg %p291
        $region70: #{text_model_pred_forward.1} parent=39 // pred_check_branch
          %664 = sbr.rel (%p662) target = $region72
        $region71: #{text_model_pred_forward.1} parent=39 // pred_region
          %p665 = scmp.lt.s32.totalorder %s43, 1
          %s666 = scalar_select %p665, %s43, 1
          %s667 = scalar_lea.vmem %s9, %s666
        $region72: #{text_model_pred_forward.1} parent=39 // pred_fallthru
          _
        // Predicated region
        $region73: #{text_model_pred_forward.1} parent=39 // pred_check
          %p668 = pneg %p317
        $region74: #{text_model_pred_forward.1} parent=39 // pred_check_branch
          %670 = sbr.rel (%p668) target = $region76
        $region75: #{text_model_pred_forward.1} parent=39 // pred_region
          %s671 = sand.u32 %s35, 1
          %s672 = scalar_lea.sflag [#allocation8], %s671
          %s673 = sand.u32 %s307, 1
          %s674 = smul.addr %s673, 128
          %s675 = scalar_lea.vmem [#allocation7], %s674
          %677 = vsyncadd %s672, 0
          %s678 = smul.addr %s43, 32
          %s679 = smul.addr %s678, 4
          %s680 = scalar_lea.hbm %s10, %s679
          %s681 = sshll.u32 %s680, 4
          %s682 = int_to_ptr.hbm [resolvable:$true] %s681
          %s683 = sshll.u32 %s675, 4
          %s684 = int_to_ptr.vmem [resolvable:$true] %s683
          %689 = dma.hbm_to_vmem [thread:$0]  %s682, 2048, %s684, %s672, 128, 128, 8
        $region76: #{text_model_pred_forward.1} parent=39 // pred_fallthru
          _
        // Predicated region
        $region77: #{text_model_pred_forward.1} parent=39 // pred_check
          %p690 = pneg %p343
        $region78: #{text_model_pred_forward.1} parent=39 // pred_check_branch
          %692 = sbr.rel (%p690) target = $region80
        $region79: #{text_model_pred_forward.1} parent=39 // pred_region
          %p693 = scmp.lt.s32.totalorder %s43, 1
          %s694 = scalar_select %p693, %s43, 1
          %s695 = smul.addr %s694, 2
          %s696 = scalar_lea.vmem %s11, %s695
        $region80: #{text_model_pred_forward.1} parent=39 // pred_fallthru
          _
        // Predicated region
        $region81: #{text_model_pred_forward.1} parent=39 // pred_check
          %p697 = pneg %p369
        $region82: #{text_model_pred_forward.1} parent=39 // pred_check_branch
          %699 = sbr.rel (%p697) target = $region84
        $region83: #{text_model_pred_forward.1} parent=39 // pred_region
          %s700 = sand.u32 %s35, 1
          %s701 = scalar_lea.sflag [#allocation8], %s700
          %s702 = sand.u32 %s359, 1
          %s703 = smul.addr %s702, 128
          %s704 = scalar_lea.vmem [#allocation9], %s703
          %706 = vsyncadd %s701, 0
          %s707 = smul.addr %s43, 32
          %s708 = smul.addr %s707, 4
          %s709 = scalar_lea.hbm %s12, %s708
          %s710 = sshll.u32 %s709, 4
          %s711 = int_to_ptr.hbm [resolvable:$true] %s710
          %s712 = sshll.u32 %s704, 4
          %s713 = int_to_ptr.vmem [resolvable:$true] %s712
          %718 = dma.hbm_to_vmem [thread:$0]  %s711, 2048, %s713, %s701, 64, 64, 4
        $region84: #{text_model_pred_forward.1} parent=39 // pred_fallthru
          _
        // Predicated region
        $region85: #{text_model_pred_forward.1} parent=39 // pred_check
          %p719 = pneg %p395
        $region86: #{text_model_pred_forward.1} parent=39 // pred_check_branch
          %721 = sbr.rel (%p719) target = $region88
        $region87: #{text_model_pred_forward.1} parent=39 // pred_region
          %p722 = scmp.lt.s32.totalorder %s43, 1
          %s723 = scalar_select %p722, %s43, 1
          %s724 = scalar_lea.vmem %s13, %s723
        $region88: #{text_model_pred_forward.1} parent=39 // pred_fallthru
          _
        // Predicated region
        $region89: #{text_model_pred_forward.1} parent=39 // pred_check
          %p725 = pneg %p421
        $region90: #{text_model_pred_forward.1} parent=39 // pred_check_branch
          %727 = sbr.rel (%p725) target = $region92
        $region91: #{text_model_pred_forward.1} parent=39 // pred_region
          %p728 = scmp.lt.s32.totalorder %s43, 1
          %s729 = scalar_select %p728, %s43, 1
          %s730 = scalar_lea.vmem %s14, %s729
        $region92: #{text_model_pred_forward.1} parent=39 // pred_fallthru
          _
        // Predicated region
        $region93: #{text_model_pred_forward.1} parent=39 // pred_check
          %p731 = pneg %p447
        $region94: #{text_model_pred_forward.1} parent=39 // pred_check_branch
          %733 = sbr.rel (%p731) target = $region96
        $region95: #{text_model_pred_forward.1} parent=39 // pred_region
          %p734 = scmp.lt.s32.totalorder %s43, 1
          %s735 = scalar_select %p734, %s43, 1
          %s736 = scalar_lea.vmem %s15, %s735
        $region96: #{text_model_pred_forward.1} parent=39 // pred_fallthru
          _
      $region40: #{text_model_pred_forward.1} parent=5 // pred_fallthru
        _
      %p737 = scmp.le.s32.totalorder 1, %s35
      %p738 = scmp.lt.s32.totalorder %s35, 5
      %p739 = pnand %p737, %p738
      %p740 = pneg %p739
      // Predicated region
      $region97: #{text_model_pred_forward.1} parent=5 // pred_check
        _
      $region98: #{text_model_pred_forward.1} parent=5 // pred_check_branch
        %742 = sbr.rel (%p739) target = $region100
      $region99: #{text_model_pred_forward.1} parent=5 // pred_region
        %s743 = ssub.s32 %s35, 1
        %s744 = sand.u32 %s154, 1
        %s745 = scalar_lea.sflag [#allocation5], %s744
        %s746 = sand.u32 %s154, 1
        %s747 = smul.addr %s746, 192
        %s748 = scalar_lea.vmem [#allocation4], %s747
        // Predicated region
        $region101: #{text_model_pred_forward.1} parent=99 // pred_check
          %p749 = pneg %p167
        $region102: #{text_model_pred_forward.1} parent=99 // pred_check_branch
          %751 = sbr.rel (%p749) target = $region104
        $region103: #{text_model_pred_forward.1} parent=99 // pred_region
          %753 = dma.done %s745, 3072
        $region104: #{text_model_pred_forward.1} parent=99 // pred_fallthru
          _
        %s754 = sand.u32 %s40, 1
        %s755 = scalar_lea.sflag [#allocation8], %s754
        %s756 = sand.u32 %s310, 1
        %s757 = smul.addr %s756, 128
        %s758 = scalar_lea.vmem [#allocation7], %s757
        // Predicated region
        $region105: #{text_model_pred_forward.1} parent=99 // pred_check
          %p759 = pneg %p323
        $region106: #{text_model_pred_forward.1} parent=99 // pred_check_branch
          %761 = sbr.rel (%p759) target = $region108
        $region107: #{text_model_pred_forward.1} parent=99 // pred_region
          %763 = dma.done %s755, 2048
        $region108: #{text_model_pred_forward.1} parent=99 // pred_fallthru
          _
        %s764 = sand.u32 %s40, 1
        %s765 = scalar_lea.sflag [#allocation8], %s764
        %s766 = sand.u32 %s362, 1
        %s767 = smul.addr %s766, 128
        %s768 = scalar_lea.vmem [#allocation9], %s767
        // Predicated region
        $region109: #{text_model_pred_forward.1} parent=99 // pred_check
          %p769 = pneg %p375
        $region110: #{text_model_pred_forward.1} parent=99 // pred_check_branch
          %771 = sbr.rel (%p769) target = $region112
        $region111: #{text_model_pred_forward.1} parent=99 // pred_region
          %773 = dma.done %s765, 2048
        $region112: #{text_model_pred_forward.1} parent=99 // pred_fallthru
          _
        %p774 = scmp.lt.s32.totalorder %s44, 1
        %s775 = scalar_select %p774, %s44, 1
        %s776 = scalar_lea.vmem %s0, %s775
        %p777 = pneg %p73
        %p778 = pneg %p70
        %p779 = scmp.lt.s32.totalorder %s44, 1
        %s780 = scalar_select %p779, %s44, 1
        %s781 = smul.addr %s780, 8
        %s782 = scalar_lea.vmem %s1, %s781
        %p783 = pneg %p99
        %p784 = pneg %p96
        %p785 = pneg %p120
        %p786 = pneg %p117
        %p787 = pneg %p141
        %p788 = pneg %p138
        %s789 = sand.u32 %s154, 1
        %s790 = scalar_lea.sflag [#allocation5], %s789
        %s791 = sand.u32 %s154, 1
        %s792 = smul.addr %s791, 192
        %s793 = scalar_lea.vmem [#allocation4], %s792
        %p794 = pneg %p167
        %p795 = pneg %p164
        %p796 = scmp.lt.s32.totalorder %s45, 1
        %s797 = scalar_select %p796, %s45, 1
        %s798 = smul.addr %s797, 3
        %s799 = scalar_lea.vmem %s5, %s798
        %p800 = pneg %p193
        %p801 = pneg %p190
        %p802 = scmp.lt.s32.totalorder %s45, 1
        %s803 = scalar_select %p802, %s45, 1
        %s804 = smul.addr %s803, 16
        %s805 = smul.addr %s804, 4
        %s806 = scalar_lea.vmem %s6, %s805
        %p807 = pneg %p219
        %p808 = pneg %p216
        %p809 = scmp.lt.s32.totalorder %s45, 1
        %s810 = scalar_select %p809, %s45, 1
        %s811 = scalar_lea.vmem %s7, %s810
        %p812 = pneg %p245
        %p813 = pneg %p242
        %p814 = scmp.lt.s32.totalorder %s45, 1
        %s815 = scalar_select %p814, %s45, 1
        %s816 = scalar_lea.vmem %s8, %s815
        %p817 = pneg %p271
        %p818 = pneg %p268
        %p819 = scmp.lt.s32.totalorder %s45, 1
        %s820 = scalar_select %p819, %s45, 1
        %s821 = scalar_lea.vmem %s9, %s820
        %p822 = pneg %p297
        %p823 = pneg %p294
        %s824 = sand.u32 %s40, 1
        %s825 = scalar_lea.sflag [#allocation8], %s824
        %s826 = sand.u32 %s310, 1
        %s827 = smul.addr %s826, 128
        %s828 = scalar_lea.vmem [#allocation7], %s827
        %p829 = pneg %p323
        %p830 = pneg %p320
        %p831 = scmp.lt.s32.totalorder %s45, 1
        %s832 = scalar_select %p831, %s45, 1
        %s833 = smul.addr %s832, 2
        %s834 = scalar_lea.vmem %s11, %s833
        %p835 = pneg %p349
        %p836 = pneg %p346
        %s837 = sand.u32 %s40, 1
        %s838 = scalar_lea.sflag [#allocation8], %s837
        %s839 = sand.u32 %s362, 1
        %s840 = smul.addr %s839, 128
        %s841 = scalar_lea.vmem [#allocation9], %s840
        %p842 = pneg %p375
        %p843 = pneg %p372
        %p844 = scmp.lt.s32.totalorder %s45, 1
        %s845 = scalar_select %p844, %s45, 1
        %s846 = scalar_lea.vmem %s13, %s845
        %p847 = pneg %p401
        %p848 = pneg %p398
        %p849 = scmp.lt.s32.totalorder %s45, 1
        %s850 = scalar_select %p849, %s45, 1
        %s851 = scalar_lea.vmem %s14, %s850
        %p852 = pneg %p427
        %p853 = pneg %p424
        %p854 = scmp.lt.s32.totalorder %s45, 1
        %s855 = scalar_select %p854, %s45, 1
        %s856 = scalar_lea.vmem %s15, %s855
        %p857 = pneg %p453
        %p858 = pneg %p450
        %p859 = pneg %p474
        %p860 = pneg %p471
        %p861 = pneg %p495
        %p862 = pneg %p492
        %p863 = pneg %p516
        %p864 = pneg %p513
        %p865 = pneg %p537
        %p866 = pneg %p534
        %p867 = pneg %p563
        %p868 = pneg %p560
        %s869 = sand.u32 %s550, 1
        %s870 = scalar_lea.sflag [#allocation6], %s869
        %s871 = sand.u32 %s550, 1
        %s872 = scalar_lea.vmem [#allocation10], %s871
        %p873 = scmp.lt.s32.totalorder %s44, 1
        %s874 = scalar_select %p873, %s44, 1
        %s875 = scalar_lea.vmem %s0, %s874
        %p876 = scmp.lt.s32.totalorder %s44, 1
        %s877 = scalar_select %p876, %s44, 1
        %s878 = smul.addr %s877, 8
        %s879 = scalar_lea.vmem %s1, %s878
        %p880 = scmp.lt.s32.totalorder %s45, 1
        %s881 = scalar_select %p880, %s45, 1
        %s882 = smul.addr %s881, 3
        %s883 = scalar_lea.vmem %s5, %s882
        %p884 = scmp.lt.s32.totalorder %s45, 1
        %s885 = scalar_select %p884, %s45, 1
        %s886 = smul.addr %s885, 16
        %s887 = smul.addr %s886, 4
        %s888 = scalar_lea.vmem %s6, %s887
        %p889 = scmp.lt.s32.totalorder %s45, 1
        %s890 = scalar_select %p889, %s45, 1
        %s891 = scalar_lea.vmem %s7, %s890
        %p892 = scmp.lt.s32.totalorder %s45, 1
        %s893 = scalar_select %p892, %s45, 1
        %s894 = scalar_lea.vmem %s8, %s893
        %p895 = scmp.lt.s32.totalorder %s45, 1
        %s896 = scalar_select %p895, %s45, 1
        %s897 = scalar_lea.vmem %s9, %s896
        %p898 = scmp.lt.s32.totalorder %s45, 1
        %s899 = scalar_select %p898, %s45, 1
        %s900 = smul.addr %s899, 2
        %s901 = scalar_lea.vmem %s11, %s900
        %p902 = scmp.lt.s32.totalorder %s45, 1
        %s903 = scalar_select %p902, %s45, 1
        %s904 = scalar_lea.vmem %s13, %s903
        %p905 = scmp.lt.s32.totalorder %s45, 1
        %s906 = scalar_select %p905, %s45, 1
        %s907 = scalar_lea.vmem %s14, %s906
        %p908 = scmp.lt.s32.totalorder %s45, 1
        %s909 = scalar_select %p908, %s45, 1
        %s910 = scalar_lea.vmem %s15, %s909
        %p912 = scmp.eq.s32.totalorder %s45, 0
        // Predicated region
        $region113: #{text_model_pred_forward.1} parent=99 // pred_check
          %p913 = pneg %p912
        $region114: #{text_model_pred_forward.1} parent=99 // pred_check_branch
          %915 = sbr.rel (%p913) target = $region116
        $region115: #{text_model_pred_forward.1} parent=99 // pred_region
          %v916 = vld [vmem:[%s879] sm:$0xff]
          %v917 = vld [vmem:[%s2] sm:$0x1]
          %v918 = vld [vmem:[%s3] sm:$0x1]
          %919 = vadd.xlane.f32.xlu0 %v916
          %v920 = vpop.xlane.xlu0 %919
          %v921 = vrcp.pop 128.0
          %v922 = vmul.f32 128.0, %v921
          %v923 = vsub.f32 1.0, %v922
          %v924 = vmul.f32 %v921, %v923
          %v925 = vadd.f32 %v921, %v924
          %vm926 = vweird.f32 %v921
          %v927 = vsel %vm926, %v921, %v925
          %v928 = vmul.f32 %v920, %v927
          %v929 = vsub.f32 %v916, %v928
          %v930 = vmul.f32 %v929, %v929
          %931 = vadd.xlane.f32.xlu0 %v930
          %v932 = vpop.xlane.xlu0 %931
          %v933 = vmul.f32 %v932, %v927
          %v934 = vadd.f32 %v933, 5e-05
          %v935 = vrsqrt.pop %v934
          %v936 = vmul.f32 %v935, %v934
          %v937 = vmul.f32 %v936, %v935
          %v938 = vmul.f32 0.5, %v937
          %v939 = vsub.f32 1.5, %v938
          %v940 = vmul.f32 %v935, %v939
          %vm941 = vweird.f32 %v934
          %vm942 = vweird.f32 %v935
          %vm943 = vmor %vm941, %vm942
          %v944 = vsel %vm943, %v935, %v940
          %v945 = vmul.f32 %v929, %v944
          %v947 = vperm.slane %v917, 0
          %v949 = vmul.f32 %v945, %v947
          %v951 = vperm.slane %v918, 0
          %v953 = vadd.f32 %v949, %v951
          %954 = vst [vmem:[#allocation2] sm:$0xff] %v953
        $region116: #{text_model_pred_forward.1} parent=99 // pred_fallthru
          _
        %v955 = vld [vmem:[#allocation2] sm:$0xff]
        %v956 = vpack.c.bf16 %v955, %v955
        %v957 = vld [vmem:[%s748] sm:$0xff]
        %v958 = vld [vmem:[%s748 + $0x8] sm:$0xf]
        %v959 = vld [vmem:[%s748 + $0xc] sm:$0xff]
        %v960 = vld [vmem:[%s748 + $0x14] sm:$0xf]
        %v961 = vld [vmem:[%s748 + $0x18] sm:$0xff]
        %v962 = vld [vmem:[%s748 + $0x20] sm:$0xf]
        %v963 = vld [vmem:[%s748 + $0x24] sm:$0xff]
        %v964 = vld [vmem:[%s748 + $0x2c] sm:$0xf]
        %v965 = vld [vmem:[%s748 + $0x30] sm:$0xff]
        %v966 = vld [vmem:[%s748 + $0x38] sm:$0xf]
        %v967 = vld [vmem:[%s748 + $0x3c] sm:$0xff]
        %v968 = vld [vmem:[%s748 + $0x44] sm:$0xf]
        %v969 = vld [vmem:[%s748 + $0x48] sm:$0xff]
        %v970 = vld [vmem:[%s748 + $0x50] sm:$0xf]
        %v971 = vld [vmem:[%s748 + $0x54] sm:$0xff]
        %v972 = vld [vmem:[%s748 + $0x5c] sm:$0xf]
        %v973 = vld [vmem:[%s748 + $0x60] sm:$0xff]
        %v974 = vld [vmem:[%s748 + $0x68] sm:$0xf]
        %v975 = vld [vmem:[%s748 + $0x6c] sm:$0xff]
        %v976 = vld [vmem:[%s748 + $0x74] sm:$0xf]
        %v977 = vld [vmem:[%s748 + $0x78] sm:$0xff]
        %v978 = vld [vmem:[%s748 + $0x80] sm:$0xf]
        %v979 = vld [vmem:[%s748 + $0x84] sm:$0xff]
        %v980 = vld [vmem:[%s748 + $0x8c] sm:$0xf]
        %v981 = vld [vmem:[%s748 + $0x90] sm:$0xff]
        %v982 = vld [vmem:[%s748 + $0x98] sm:$0xf]
        %v983 = vld [vmem:[%s748 + $0x9c] sm:$0xff]
        %v984 = vld [vmem:[%s748 + $0xa4] sm:$0xf]
        %v985 = vld [vmem:[%s748 + $0xa8] sm:$0xff]
        %v986 = vld [vmem:[%s748 + $0xb0] sm:$0xf]
        %v987 = vld [vmem:[%s748 + $0xb4] sm:$0xff]
        %v988 = vld [vmem:[%s748 + $0xbc] sm:$0xf]
        %v989 = vld [vmem:[%s883] sm:$0x7]
        %v991 = vperm.slane %v989, 0
        %v992 = vperm.slane %v989, 1
        %v993 = vperm.slane %v989, 2
        %v1029 = vunpack.c.l.b16 %v957
        %v1030 = vunpack.c.h.b16 %v957
        %v1031 = vunpack.c.l.b16 %v958
        %v1032 = vunpack.c.l.b16 %v959
        %v1033 = vunpack.c.h.b16 %v959
        %v1034 = vunpack.c.l.b16 %v960
        %v1035 = vunpack.c.l.b16 %v961
        %v1036 = vunpack.c.h.b16 %v961
        %v1037 = vunpack.c.l.b16 %v962
        %v1038 = vunpack.c.l.b16 %v963
        %v1039 = vunpack.c.h.b16 %v963
        %v1040 = vunpack.c.l.b16 %v964
        %v1041 = vunpack.c.l.b16 %v965
        %v1042 = vunpack.c.h.b16 %v965
        %v1043 = vunpack.c.l.b16 %v966
        %v1044 = vunpack.c.l.b16 %v967
        %v1045 = vunpack.c.h.b16 %v967
        %v1046 = vunpack.c.l.b16 %v968
        %v1047 = vunpack.c.l.b16 %v969
        %v1048 = vunpack.c.h.b16 %v969
        %v1049 = vunpack.c.l.b16 %v970
        %v1050 = vunpack.c.l.b16 %v971
        %v1051 = vunpack.c.h.b16 %v971
        %v1052 = vunpack.c.l.b16 %v972
        %v1053 = vunpack.c.l.b16 %v973
        %v1054 = vunpack.c.h.b16 %v973
        %v1055 = vunpack.c.l.b16 %v974
        %v1056 = vunpack.c.l.b16 %v975
        %v1057 = vunpack.c.h.b16 %v975
        %v1058 = vunpack.c.l.b16 %v976
        %v1059 = vunpack.c.l.b16 %v977
        %v1060 = vunpack.c.h.b16 %v977
        %v1061 = vunpack.c.l.b16 %v978
        %v1062 = vunpack.c.l.b16 %v979
        %v1063 = vunpack.c.h.b16 %v979
        %v1064 = vunpack.c.l.b16 %v980
        %v1065 = vunpack.c.l.b16 %v981
        %v1066 = vunpack.c.h.b16 %v981
        %v1067 = vunpack.c.l.b16 %v982
        %v1068 = vunpack.c.l.b16 %v983
        %v1069 = vunpack.c.h.b16 %v983
        %v1070 = vunpack.c.l.b16 %v984
        %v1071 = vunpack.c.l.b16 %v985
        %v1072 = vunpack.c.h.b16 %v985
        %v1073 = vunpack.c.l.b16 %v986
        %v1074 = vunpack.c.l.b16 %v987
        %v1075 = vunpack.c.h.b16 %v987
        %v1076 = vunpack.c.l.b16 %v988
        %v1077 = vpack.c.b16 %v1032, %v1029
        %v1078 = vpack.c.b16 %v1033, %v1030
        %v1079 = vpack.c.b16 %v1034, %v1031
        %v1080 = vpack.c.b16 %v1038, %v1035
        %v1081 = vpack.c.b16 %v1039, %v1036
        %v1082 = vpack.c.b16 %v1040, %v1037
        %v1083 = vpack.c.b16 %v1044, %v1041
        %v1084 = vpack.c.b16 %v1045, %v1042
        %v1085 = vpack.c.b16 %v1046, %v1043
        %v1086 = vpack.c.b16 %v1050, %v1047
        %v1087 = vpack.c.b16 %v1051, %v1048
        %v1088 = vpack.c.b16 %v1052, %v1049
        %v1089 = vpack.c.b16 %v1056, %v1053
        %v1090 = vpack.c.b16 %v1057, %v1054
        %v1091 = vpack.c.b16 %v1058, %v1055
        %v1092 = vpack.c.b16 %v1062, %v1059
        %v1093 = vpack.c.b16 %v1063, %v1060
        %v1094 = vpack.c.b16 %v1064, %v1061
        %v1095 = vpack.c.b16 %v1068, %v1065
        %v1096 = vpack.c.b16 %v1069, %v1066
        %v1097 = vpack.c.b16 %v1070, %v1067
        %v1098 = vpack.c.b16 %v1074, %v1071
        %v1099 = vpack.c.b16 %v1075, %v1072
        %v1100 = vpack.c.b16 %v1076, %v1073
        %1125 = vmatpush.bf16.msra.mxu0 %v1098
        %1126 = vmatpush.bf16.msra.mxu0 %v1095
        %1127 = vmatpush.bf16.msra.mxu0 %v1092
        %1128 = vmatpush.bf16.msra.mxu0 %v1089
        %1129 = vmatpush.bf16.msra.mxu0 %v1086
        %1130 = vmatpush.bf16.msra.mxu0 %v1083
        %1131 = vmatpush.bf16.msra.mxu0 %v1080
        %1132 = vmatpush.bf16.msra.mxu0 %v1077
        %1133 = vmatmul.bf16.gmra.mxu0 %v956
        %v1134 = vpop.f32.mrf.mxu0
        %v1135 = vadd.f32 %v991, %v1134
        %v1136 = vpop.f32.mrf.mxu0
        %1137 = vdwg.mxu0
        %1138 = vmatpush.bf16.msra.mxu0 %v1099
        %1139 = vmatpush.bf16.msra.mxu0 %v1096
        %1140 = vmatpush.bf16.msra.mxu0 %v1093
        %1141 = vmatpush.bf16.msra.mxu0 %v1090
        %1142 = vmatpush.bf16.msra.mxu0 %v1087
        %1143 = vmatpush.bf16.msra.mxu0 %v1084
        %1144 = vmatpush.bf16.msra.mxu0 %v1081
        %1145 = vmatpush.bf16.msra.mxu0 %v1078
        %1146 = vmatmul.bf16.gmra.mxu0 %v956
        %v1147 = vpop.f32.mrf.mxu0
        %v1148 = vadd.f32 %v992, %v1147
        %v1149 = vpop.f32.mrf.mxu0
        %1150 = vdwg.mxu0
        %1151 = vmatpush.bf16.msra.mxu0 %v1100
        %1152 = vmatpush.bf16.msra.mxu0 %v1097
        %1153 = vmatpush.bf16.msra.mxu0 %v1094
        %1154 = vmatpush.bf16.msra.mxu0 %v1091
        %1155 = vmatpush.bf16.msra.mxu0 %v1088
        %1156 = vmatpush.bf16.msra.mxu0 %v1085
        %1157 = vmatpush.bf16.msra.mxu0 %v1082
        %1158 = vmatpush.bf16.msra.mxu0 %v1079
        %1159 = vmatmul.bf16.gmra.mxu0 %v956
        %v1160 = vpop.f32.mrf.mxu0
        %v1161 = vadd.f32 %v993, %v1160
        %v1162 = vpop.f32.mrf.mxu0
        %1163 = vdwg.mxu0
        %v1164 = vpack.c.bf16 %v1148, %v1135
        %v1165 = vpack.c.bf16 %v1161, %v1161
        %v1167 = vrot.slane %v1164, 4
        %v1168 = vld [vmem:[%s875] sm:$0x1]
        %v1170 = vperm.slane %v1168, 0
        %vm1172 = vcmask 523264
        %v1174 = vsel %vm1172, %v1164, 0
        %v1177 = vsel %vm1172, %v1167, 0
        %1179 = vmatpush.bf16.xpose.msra.mxu0 0
        %1180 = vmatpush.bf16.xpose.msra.mxu0 0
        %1181 = vmatpush.bf16.xpose.msra.mxu0 0
        %1182 = vmatpush.bf16.xpose.msra.mxu0 0
        %1183 = vmatpush.bf16.xpose.msra.mxu0 0
        %1184 = vmatpush.bf16.xpose.msra.mxu0 0
        %1185 = vmatpush.bf16.xpose.msra.mxu0 0
        %1186 = vmatpush.bf16.xpose.msra.mxu0 %v1177
        %1187 = vmatmul.bf16.gmra.mxu0 %v1174
        %v1188 = vpop.f32.mrf.mxu0
        %v1189 = vadd.f32 %v1170, %v1188
        %v1190 = vpop.f32.mrf.mxu0
        %1191 = vdwg.mxu0
        %vm1192 = vcmask 64512
        %v1193 = vsel %vm1192, %v1189, -inf
        %1194 = vmax.xlane.f32.xlu0 %v1193
        %v1195 = vpop.xlane.xlu0 %1194
        %v1196 = vsub.f32 %v1189, %v1195
        %v1197 = vmul.f32 %v1196, 1.442695
        %v1198 = vpow.pop %v1197
        %v1199 = vsel %vm1192, %v1198, 0.0
        %1200 = vadd.xlane.f32.xlu0 %v1199
        %v1201 = vpop.xlane.xlu0 %1200
        %v1202 = vrcp.pop %v1201
        %v1203 = vmul.f32 %v1198, %v1202
        %v1204 = vpack.c.bf16 %v1203, %v1203
        %v1206 = vsel %vm1192, %v1204, 0
        %vm1208 = vcmask 1043456
        %v1210 = vsel %vm1208, %v1165, 0
        %1212 = vmatpush.bf16.msra.mxu0 0
        %1213 = vmatpush.bf16.msra.mxu0 0
        %1214 = vmatpush.bf16.msra.mxu0 0
        %1215 = vmatpush.bf16.msra.mxu0 0
        %1216 = vmatpush.bf16.msra.mxu0 0
        %1217 = vmatpush.bf16.msra.mxu0 0
        %1218 = vmatpush.bf16.msra.mxu0 0
        %1219 = vmatpush.bf16.msra.mxu0 %v1210
        %1220 = vmatmul.bf16.gmra.mxu0 %v1206
        %v1221 = vpop.f32.mrf.mxu0
        %v1222 = vadd.f32 0.0, %v1221
        %v1223 = vpop.f32.mrf.mxu0
        %1224 = vdwg.mxu0
        %1225 = vst.msk [vmem:[#allocation3] sm:$0xff] %vm1172, %v1222
        %v1226 = vunpack.c.l.b16 %v1164
        %v1227 = vpack.c.b16 %v1226, %v1226
        %1228 = vrot.lane.b32.xlu0 %v1227, 64
        %v1229 = vpop.permute.xlu0 %1228
        %v1230 = vunpack.c.l.b16 %v1167
        %v1231 = vpack.c.b16 %v1230, %v1230
        %1232 = vrot.lane.b32.xlu0 %v1231, 64
        %v1233 = vpop.permute.xlu0 %1232
        %v1235 = vsel %vm1172, %v1229, 0
        %v1238 = vsel %vm1172, %v1233, 0
        %1240 = vmatpush.bf16.xpose.msra.mxu0 0
        %1241 = vmatpush.bf16.xpose.msra.mxu0 0
        %1242 = vmatpush.bf16.xpose.msra.mxu0 0
        %1243 = vmatpush.bf16.xpose.msra.mxu0 0
        %1244 = vmatpush.bf16.xpose.msra.mxu0 0
        %1245 = vmatpush.bf16.xpose.msra.mxu0 0
        %1246 = vmatpush.bf16.xpose.msra.mxu0 0
        %1247 = vmatpush.bf16.xpose.msra.mxu0 %v1238
        %1248 = vmatmul.bf16.gmra.mxu0 %v1235
        %v1249 = vpop.f32.mrf.mxu0
        %v1250 = vadd.f32 %v1170, %v1249
        %v1251 = vpop.f32.mrf.mxu0
        %1252 = vdwg.mxu0
        %v1253 = vsel %vm1192, %v1250, -inf
        %1254 = vmax.xlane.f32.xlu0 %v1253
        %v1255 = vpop.xlane.xlu0 %1254
        %v1256 = vsub.f32 %v1250, %v1255
        %v1257 = vmul.f32 %v1256, 1.442695
        %v1258 = vpow.pop %v1257
        %v1259 = vsel %vm1192, %v1258, 0.0
        %1260 = vadd.xlane.f32.xlu0 %v1259
        %v1261 = vpop.xlane.xlu0 %1260
        %v1262 = vrcp.pop %v1261
        %v1263 = vmul.f32 %v1258, %v1262
        %v1264 = vpack.c.bf16 %v1263, %v1263
        %v1266 = vunpack.c.l.b16 %v1165
        %v1267 = vpack.c.b16 %v1266, %v1266
        %1268 = vrot.lane.b32.xlu0 %v1267, 64
        %v1269 = vpop.permute.xlu0 %1268
        %v1271 = vsel %vm1192, %v1264, 0
        %v1274 = vsel %vm1208, %v1269, 0
        %1276 = vmatpush.bf16.msra.mxu0 0
        %1277 = vmatpush.bf16.msra.mxu0 0
        %1278 = vmatpush.bf16.msra.mxu0 0
        %1279 = vmatpush.bf16.msra.mxu0 0
        %1280 = vmatpush.bf16.msra.mxu0 0
        %1281 = vmatpush.bf16.msra.mxu0 0
        %1282 = vmatpush.bf16.msra.mxu0 0
        %1283 = vmatpush.bf16.msra.mxu0 %v1274
        %1284 = vmatmul.bf16.gmra.mxu0 %v1271
        %v1285 = vpop.f32.mrf.mxu0
        %v1286 = vadd.f32 0.0, %v1285
        %v1287 = vpop.f32.mrf.mxu0
        %1288 = vdwg.mxu0
        %1290 = vrot.lane.b32.xlu0 %v1286, 64
        %v1291 = vpop.permute.xlu0 %1290
        %vm1293 = vcmask 1048064
        %1294 = vst.msk [vmem:[#allocation3] sm:$0xff] %vm1293, %v1291
        %v1295 = vld [vmem:[#allocation3] sm:$0xff]
        %v1296 = vpack.c.bf16 %v1295, %v1295
        %v1297 = vld [vmem:[%s888] sm:$0xf]
        %v1298 = vld [vmem:[%s888 + $0x4] sm:$0xf]
        %v1299 = vld [vmem:[%s888 + $0x8] sm:$0xf]
        %v1300 = vld [vmem:[%s888 + $0xc] sm:$0xf]
        %v1301 = vld [vmem:[%s888 + $0x10] sm:$0xf]
        %v1302 = vld [vmem:[%s888 + $0x14] sm:$0xf]
        %v1303 = vld [vmem:[%s888 + $0x18] sm:$0xf]
        %v1304 = vld [vmem:[%s888 + $0x1c] sm:$0xf]
        %v1305 = vld [vmem:[%s888 + $0x20] sm:$0xf]
        %v1306 = vld [vmem:[%s888 + $0x24] sm:$0xf]
        %v1307 = vld [vmem:[%s888 + $0x28] sm:$0xf]
        %v1308 = vld [vmem:[%s888 + $0x2c] sm:$0xf]
        %v1309 = vld [vmem:[%s888 + $0x30] sm:$0xf]
        %v1310 = vld [vmem:[%s888 + $0x34] sm:$0xf]
        %v1311 = vld [vmem:[%s888 + $0x38] sm:$0xf]
        %v1312 = vld [vmem:[%s888 + $0x3c] sm:$0xf]
        %v1313 = vld [vmem:[%s891] sm:$0x1]
        %v1315 = vperm.slane %v1313, 0
        %v1333 = vunpack.c.l.b16 %v1297
        %v1334 = vunpack.c.l.b16 %v1298
        %v1335 = vunpack.c.l.b16 %v1299
        %v1336 = vunpack.c.l.b16 %v1300
        %v1337 = vunpack.c.l.b16 %v1301
        %v1338 = vunpack.c.l.b16 %v1302
        %v1339 = vunpack.c.l.b16 %v1303
        %v1340 = vunpack.c.l.b16 %v1304
        %v1341 = vunpack.c.l.b16 %v1305
        %v1342 = vunpack.c.l.b16 %v1306
        %v1343 = vunpack.c.l.b16 %v1307
        %v1344 = vunpack.c.l.b16 %v1308
        %v1345 = vunpack.c.l.b16 %v1309
        %v1346 = vunpack.c.l.b16 %v1310
        %v1347 = vunpack.c.l.b16 %v1311
        %v1348 = vunpack.c.l.b16 %v1312
        %v1349 = vpack.c.b16 %v1334, %v1333
        %v1350 = vpack.c.b16 %v1336, %v1335
        %v1351 = vpack.c.b16 %v1338, %v1337
        %v1352 = vpack.c.b16 %v1340, %v1339
        %v1353 = vpack.c.b16 %v1342, %v1341
        %v1354 = vpack.c.b16 %v1344, %v1343
        %v1355 = vpack.c.b16 %v1346, %v1345
        %v1356 = vpack.c.b16 %v1348, %v1347
        %1365 = vmatpush.bf16.msra.mxu0 %v1356
        %1366 = vmatpush.bf16.msra.mxu0 %v1355
        %1367 = vmatpush.bf16.msra.mxu0 %v1354
        %1368 = vmatpush.bf16.msra.mxu0 %v1353
        %1369 = vmatpush.bf16.msra.mxu0 %v1352
        %1370 = vmatpush.bf16.msra.mxu0 %v1351
        %1371 = vmatpush.bf16.msra.mxu0 %v1350
        %1372 = vmatpush.bf16.msra.mxu0 %v1349
        %1373 = vmatmul.bf16.gmra.mxu0 %v1296
        %v1374 = vpop.f32.mrf.mxu0
        %v1375 = vadd.f32 %v1315, %v1374
        %v1376 = vpop.f32.mrf.mxu0
        %1377 = vdwg.mxu0
        %v1378 = vadd.f32 %v1375, %v955
        %v1379 = vld [vmem:[%s894] sm:$0x1]
        %v1380 = vld [vmem:[%s897] sm:$0x1]
        %1381 = vadd.xlane.f32.xlu0 %v1378
        %v1382 = vpop.xlane.xlu0 %1381
        %v1383 = vrcp.pop 128.0
        %v1384 = vmul.f32 128.0, %v1383
        %v1385 = vsub.f32 1.0, %v1384
        %v1386 = vmul.f32 %v1383, %v1385
        %v1387 = vadd.f32 %v1383, %v1386
        %vm1388 = vweird.f32 %v1383
        %v1389 = vsel %vm1388, %v1383, %v1387
        %v1390 = vmul.f32 %v1382, %v1389
        %v1391 = vsub.f32 %v1378, %v1390
        %v1392 = vmul.f32 %v1391, %v1391
        %1393 = vadd.xlane.f32.xlu0 %v1392
        %v1394 = vpop.xlane.xlu0 %1393
        %v1395 = vmul.f32 %v1394, %v1389
        %v1396 = vadd.f32 %v1395, 5e-05
        %v1397 = vrsqrt.pop %v1396
        %v1398 = vmul.f32 %v1397, %v1396
        %v1399 = vmul.f32 %v1398, %v1397
        %v1400 = vmul.f32 0.5, %v1399
        %v1401 = vsub.f32 1.5, %v1400
        %v1402 = vmul.f32 %v1397, %v1401
        %vm1403 = vweird.f32 %v1396
        %vm1404 = vweird.f32 %v1397
        %vm1405 = vmor %vm1403, %vm1404
        %v1406 = vsel %vm1405, %v1397, %v1402
        %v1407 = vmul.f32 %v1391, %v1406
        %v1409 = vperm.slane %v1379, 0
        %v1411 = vmul.f32 %v1407, %v1409
        %v1413 = vperm.slane %v1380, 0
        %v1415 = vadd.f32 %v1411, %v1413
        %v1416 = vpack.c.bf16 %v1415, %v1415
        %v1417 = vld [vmem:[%s758] sm:$0xff]
        %v1418 = vld [vmem:[%s758 + $0x8] sm:$0xff]
        %v1419 = vld [vmem:[%s758 + $0x10] sm:$0xff]
        %v1420 = vld [vmem:[%s758 + $0x18] sm:$0xff]
        %v1421 = vld [vmem:[%s758 + $0x20] sm:$0xff]
        %v1422 = vld [vmem:[%s758 + $0x28] sm:$0xff]
        %v1423 = vld [vmem:[%s758 + $0x30] sm:$0xff]
        %v1424 = vld [vmem:[%s758 + $0x38] sm:$0xff]
        %v1425 = vld [vmem:[%s758 + $0x40] sm:$0xff]
        %v1426 = vld [vmem:[%s758 + $0x48] sm:$0xff]
        %v1427 = vld [vmem:[%s758 + $0x50] sm:$0xff]
        %v1428 = vld [vmem:[%s758 + $0x58] sm:$0xff]
        %v1429 = vld [vmem:[%s758 + $0x60] sm:$0xff]
        %v1430 = vld [vmem:[%s758 + $0x68] sm:$0xff]
        %v1431 = vld [vmem:[%s758 + $0x70] sm:$0xff]
        %v1432 = vld [vmem:[%s758 + $0x78] sm:$0xff]
        %v1433 = vld [vmem:[%s901] sm:$0x3]
        %v1435 = vperm.slane %v1433, 0
        %v1436 = vperm.slane %v1433, 1
        %v1455 = vunpack.c.l.b16 %v1417
        %v1456 = vunpack.c.h.b16 %v1417
        %v1457 = vunpack.c.l.b16 %v1418
        %v1458 = vunpack.c.h.b16 %v1418
        %v1459 = vunpack.c.l.b16 %v1419
        %v1460 = vunpack.c.h.b16 %v1419
        %v1461 = vunpack.c.l.b16 %v1420
        %v1462 = vunpack.c.h.b16 %v1420
        %v1463 = vunpack.c.l.b16 %v1421
        %v1464 = vunpack.c.h.b16 %v1421
        %v1465 = vunpack.c.l.b16 %v1422
        %v1466 = vunpack.c.h.b16 %v1422
        %v1467 = vunpack.c.l.b16 %v1423
        %v1468 = vunpack.c.h.b16 %v1423
        %v1469 = vunpack.c.l.b16 %v1424
        %v1470 = vunpack.c.h.b16 %v1424
        %v1471 = vunpack.c.l.b16 %v1425
        %v1472 = vunpack.c.h.b16 %v1425
        %v1473 = vunpack.c.l.b16 %v1426
        %v1474 = vunpack.c.h.b16 %v1426
        %v1475 = vunpack.c.l.b16 %v1427
        %v1476 = vunpack.c.h.b16 %v1427
        %v1477 = vunpack.c.l.b16 %v1428
        %v1478 = vunpack.c.h.b16 %v1428
        %v1479 = vunpack.c.l.b16 %v1429
        %v1480 = vunpack.c.h.b16 %v1429
        %v1481 = vunpack.c.l.b16 %v1430
        %v1482 = vunpack.c.h.b16 %v1430
        %v1483 = vunpack.c.l.b16 %v1431
        %v1484 = vunpack.c.h.b16 %v1431
        %v1485 = vunpack.c.l.b16 %v1432
        %v1486 = vunpack.c.h.b16 %v1432
        %v1487 = vpack.c.b16 %v1457, %v1455
        %v1488 = vpack.c.b16 %v1458, %v1456
        %v1489 = vpack.c.b16 %v1461, %v1459
        %v1490 = vpack.c.b16 %v1462, %v1460
        %v1491 = vpack.c.b16 %v1465, %v1463
        %v1492 = vpack.c.b16 %v1466, %v1464
        %v1493 = vpack.c.b16 %v1469, %v1467
        %v1494 = vpack.c.b16 %v1470, %v1468
        %v1495 = vpack.c.b16 %v1473, %v1471
        %v1496 = vpack.c.b16 %v1474, %v1472
        %v1497 = vpack.c.b16 %v1477, %v1475
        %v1498 = vpack.c.b16 %v1478, %v1476
        %v1499 = vpack.c.b16 %v1481, %v1479
        %v1500 = vpack.c.b16 %v1482, %v1480
        %v1501 = vpack.c.b16 %v1485, %v1483
        %v1502 = vpack.c.b16 %v1486, %v1484
        %1519 = vmatpush.bf16.msra.mxu0 %v1501
        %1520 = vmatpush.bf16.msra.mxu0 %v1499
        %1521 = vmatpush.bf16.msra.mxu0 %v1497
        %1522 = vmatpush.bf16.msra.mxu0 %v1495
        %1523 = vmatpush.bf16.msra.mxu0 %v1493
        %1524 = vmatpush.bf16.msra.mxu0 %v1491
        %1525 = vmatpush.bf16.msra.mxu0 %v1489
        %1526 = vmatpush.bf16.msra.mxu0 %v1487
        %1527 = vmatmul.bf16.gmra.mxu0 %v1416
        %v1528 = vpop.f32.mrf.mxu0
        %v1529 = vadd.f32 %v1435, %v1528
        %v1530 = vpop.f32.mrf.mxu0
        %1531 = vdwg.mxu0
        %1532 = vmatpush.bf16.msra.mxu0 %v1502
        %1533 = vmatpush.bf16.msra.mxu0 %v1500
        %1534 = vmatpush.bf16.msra.mxu0 %v1498
        %1535 = vmatpush.bf16.msra.mxu0 %v1496
        %1536 = vmatpush.bf16.msra.mxu0 %v1494
        %1537 = vmatpush.bf16.msra.mxu0 %v1492
        %1538 = vmatpush.bf16.msra.mxu0 %v1490
        %1539 = vmatpush.bf16.msra.mxu0 %v1488
        %1540 = vmatmul.bf16.gmra.mxu0 %v1416
        %v1541 = vpop.f32.mrf.mxu0
        %v1542 = vadd.f32 %v1436, %v1541
        %v1543 = vpop.f32.mrf.mxu0
        %1544 = vdwg.mxu0
        %v1545 = vmul.f32 %v1529, 0.5
        %v1546 = vmul.f32 %v1542, 0.5
        %v1547 = vmul.f32 %v1529, 0.044715
        %v1548 = vmul.f32 %v1542, 0.044715
        %v1549 = vmul.f32 %v1547, %v1529
        %v1550 = vmul.f32 %v1548, %v1542
        %v1551 = vmul.f32 %v1549, %v1529
        %v1552 = vmul.f32 %v1550, %v1542
        %v1553 = vadd.f32 %v1529, %v1551
        %v1554 = vadd.f32 %v1542, %v1552
        %v1555 = vmul.f32 %v1553, 0.7978846
        %v1556 = vmul.f32 %v1554, 0.7978846
        %v1557 = vtanh.pop %v1555
        %v1558 = vtanh.pop %v1556
        %v1559 = vadd.f32 %v1557, 1.0
        %v1560 = vadd.f32 %v1558, 1.0
        %v1561 = vmul.f32 %v1545, %v1559
        %v1562 = vmul.f32 %v1546, %v1560
        %v1563 = vpack.c.bf16 %v1561, %v1561
        %v1564 = vpack.c.bf16 %v1562, %v1562
        %v1565 = vld [vmem:[%s768] sm:$0xf]
        %v1566 = vld [vmem:[%s768 + $0x4] sm:$0xf]
        %v1567 = vld [vmem:[%s768 + $0x8] sm:$0xf]
        %v1568 = vld [vmem:[%s768 + $0xc] sm:$0xf]
        %v1569 = vld [vmem:[%s768 + $0x10] sm:$0xf]
        %v1570 = vld [vmem:[%s768 + $0x14] sm:$0xf]
        %v1571 = vld [vmem:[%s768 + $0x18] sm:$0xf]
        %v1572 = vld [vmem:[%s768 + $0x1c] sm:$0xf]
        %v1573 = vld [vmem:[%s768 + $0x20] sm:$0xf]
        %v1574 = vld [vmem:[%s768 + $0x24] sm:$0xf]
        %v1575 = vld [vmem:[%s768 + $0x28] sm:$0xf]
        %v1576 = vld [vmem:[%s768 + $0x2c] sm:$0xf]
        %v1577 = vld [vmem:[%s768 + $0x30] sm:$0xf]
        %v1578 = vld [vmem:[%s768 + $0x34] sm:$0xf]
        %v1579 = vld [vmem:[%s768 + $0x38] sm:$0xf]
        %v1580 = vld [vmem:[%s768 + $0x3c] sm:$0xf]
        %v1581 = vld [vmem:[%s768 + $0x40] sm:$0xf]
        %v1582 = vld [vmem:[%s768 + $0x44] sm:$0xf]
        %v1583 = vld [vmem:[%s768 + $0x48] sm:$0xf]
        %v1584 = vld [vmem:[%s768 + $0x4c] sm:$0xf]
        %v1585 = vld [vmem:[%s768 + $0x50] sm:$0xf]
        %v1586 = vld [vmem:[%s768 + $0x54] sm:$0xf]
        %v1587 = vld [vmem:[%s768 + $0x58] sm:$0xf]
        %v1588 = vld [vmem:[%s768 + $0x5c] sm:$0xf]
        %v1589 = vld [vmem:[%s768 + $0x60] sm:$0xf]
        %v1590 = vld [vmem:[%s768 + $0x64] sm:$0xf]
        %v1591 = vld [vmem:[%s768 + $0x68] sm:$0xf]
        %v1592 = vld [vmem:[%s768 + $0x6c] sm:$0xf]
        %v1593 = vld [vmem:[%s768 + $0x70] sm:$0xf]
        %v1594 = vld [vmem:[%s768 + $0x74] sm:$0xf]
        %v1595 = vld [vmem:[%s768 + $0x78] sm:$0xf]
        %v1596 = vld [vmem:[%s768 + $0x7c] sm:$0xf]
        %v1597 = vld [vmem:[%s904] sm:$0x1]
        %v1599 = vperm.slane %v1597, 0
        %v1633 = vunpack.c.l.b16 %v1565
        %v1634 = vunpack.c.l.b16 %v1566
        %v1635 = vunpack.c.l.b16 %v1567
        %v1636 = vunpack.c.l.b16 %v1568
        %v1637 = vunpack.c.l.b16 %v1569
        %v1638 = vunpack.c.l.b16 %v1570
        %v1639 = vunpack.c.l.b16 %v1571
        %v1640 = vunpack.c.l.b16 %v1572
        %v1641 = vunpack.c.l.b16 %v1573
        %v1642 = vunpack.c.l.b16 %v1574
        %v1643 = vunpack.c.l.b16 %v1575
        %v1644 = vunpack.c.l.b16 %v1576
        %v1645 = vunpack.c.l.b16 %v1577
        %v1646 = vunpack.c.l.b16 %v1578
        %v1647 = vunpack.c.l.b16 %v1579
        %v1648 = vunpack.c.l.b16 %v1580
        %v1649 = vunpack.c.l.b16 %v1581
        %v1650 = vunpack.c.l.b16 %v1582
        %v1651 = vunpack.c.l.b16 %v1583
        %v1652 = vunpack.c.l.b16 %v1584
        %v1653 = vunpack.c.l.b16 %v1585
        %v1654 = vunpack.c.l.b16 %v1586
        %v1655 = vunpack.c.l.b16 %v1587
        %v1656 = vunpack.c.l.b16 %v1588
        %v1657 = vunpack.c.l.b16 %v1589
        %v1658 = vunpack.c.l.b16 %v1590
        %v1659 = vunpack.c.l.b16 %v1591
        %v1660 = vunpack.c.l.b16 %v1592
        %v1661 = vunpack.c.l.b16 %v1593
        %v1662 = vunpack.c.l.b16 %v1594
        %v1663 = vunpack.c.l.b16 %v1595
        %v1664 = vunpack.c.l.b16 %v1596
        %v1665 = vpack.c.b16 %v1634, %v1633
        %v1666 = vpack.c.b16 %v1636, %v1635
        %v1667 = vpack.c.b16 %v1638, %v1637
        %v1668 = vpack.c.b16 %v1640, %v1639
        %v1669 = vpack.c.b16 %v1642, %v1641
        %v1670 = vpack.c.b16 %v1644, %v1643
        %v1671 = vpack.c.b16 %v1646, %v1645
        %v1672 = vpack.c.b16 %v1648, %v1647
        %v1673 = vpack.c.b16 %v1650, %v1649
        %v1674 = vpack.c.b16 %v1652, %v1651
        %v1675 = vpack.c.b16 %v1654, %v1653
        %v1676 = vpack.c.b16 %v1656, %v1655
        %v1677 = vpack.c.b16 %v1658, %v1657
        %v1678 = vpack.c.b16 %v1660, %v1659
        %v1679 = vpack.c.b16 %v1662, %v1661
        %v1680 = vpack.c.b16 %v1664, %v1663
        %1697 = vmatpush.bf16.msra.mxu0 %v1672
        %1698 = vmatpush.bf16.msra.mxu0 %v1671
        %1699 = vmatpush.bf16.msra.mxu0 %v1670
        %1700 = vmatpush.bf16.msra.mxu0 %v1669
        %1701 = vmatpush.bf16.msra.mxu0 %v1668
        %1702 = vmatpush.bf16.msra.mxu0 %v1667
        %1703 = vmatpush.bf16.msra.mxu0 %v1666
        %1704 = vmatpush.bf16.msra.mxu0 %v1665
        %1705 = vmatmul.bf16.gmra.mxu0 %v1563
        %v1706 = vpop.f32.mrf.mxu0
        %v1707 = vadd.f32 %v1599, %v1706
        %v1708 = vpop.f32.mrf.mxu0
        %1709 = vdwg.mxu0
        %1710 = vmatpush.bf16.msra.mxu0 %v1680
        %1711 = vmatpush.bf16.msra.mxu0 %v1679
        %1712 = vmatpush.bf16.msra.mxu0 %v1678
        %1713 = vmatpush.bf16.msra.mxu0 %v1677
        %1714 = vmatpush.bf16.msra.mxu0 %v1676
        %1715 = vmatpush.bf16.msra.mxu0 %v1675
        %1716 = vmatpush.bf16.msra.mxu0 %v1674
        %1717 = vmatpush.bf16.msra.mxu0 %v1673
        %1718 = vmatmul.bf16.gmra.mxu0 %v1564
        %v1719 = vpop.f32.mrf.mxu0
        %v1720 = vadd.f32 %v1707, %v1719
        %v1721 = vpop.f32.mrf.mxu0
        %1722 = vdwg.mxu0
        %v1723 = vadd.f32 %v1720, %v1415
        %v1724 = vld [vmem:[%s907] sm:$0x1]
        %v1725 = vld [vmem:[%s910] sm:$0x1]
        %1726 = vadd.xlane.f32.xlu0 %v1723
        %v1727 = vpop.xlane.xlu0 %1726
        %v1728 = vmul.f32 %v1727, %v1389
        %v1729 = vsub.f32 %v1723, %v1728
        %v1730 = vmul.f32 %v1729, %v1729
        %1731 = vadd.xlane.f32.xlu0 %v1730
        %v1732 = vpop.xlane.xlu0 %1731
        %v1733 = vmul.f32 %v1732, %v1389
        %v1734 = vadd.f32 %v1733, 5e-05
        %v1735 = vrsqrt.pop %v1734
        %v1736 = vmul.f32 %v1735, %v1734
        %v1737 = vmul.f32 %v1736, %v1735
        %v1738 = vmul.f32 0.5, %v1737
        %v1739 = vsub.f32 1.5, %v1738
        %v1740 = vmul.f32 %v1735, %v1739
        %vm1741 = vweird.f32 %v1734
        %vm1742 = vweird.f32 %v1735
        %vm1743 = vmor %vm1741, %vm1742
        %v1744 = vsel %vm1743, %v1735, %v1740
        %v1745 = vmul.f32 %v1729, %v1744
        %v1747 = vperm.slane %v1724, 0
        %v1749 = vmul.f32 %v1745, %v1747
        %v1751 = vperm.slane %v1725, 0
        %v1753 = vadd.f32 %v1749, %v1751
        %1754 = vst [vmem:[#allocation2] sm:$0xff] %v1753
        %p1755 = scmp.eq.s32.totalorder %s45, 1
        // Predicated region
        $region117: #{text_model_pred_forward.1} parent=99 // pred_check
          %p1756 = pneg %p1755
        $region118: #{text_model_pred_forward.1} parent=99 // pred_check_branch
          %1758 = sbr.rel (%p1756) target = $region120
        $region119: #{text_model_pred_forward.1} parent=99 // pred_region
          %v1759 = vld [vmem:[#allocation2] sm:$0x1]
          %v1760 = vpack.c.bf16 %v1759, %v1759
          %v1761 = vld [vmem:[%s16] sm:$0xf]
          %v1762 = vld [vmem:[%s16 + $0x4] sm:$0xf]
          %v1763 = vld [vmem:[%s16 + $0x8] sm:$0xf]
          %v1764 = vld [vmem:[%s16 + $0xc] sm:$0xf]
          %v1765 = vld [vmem:[%s16 + $0x10] sm:$0xf]
          %v1766 = vld [vmem:[%s16 + $0x14] sm:$0xf]
          %v1767 = vld [vmem:[%s16 + $0x18] sm:$0xf]
          %v1768 = vld [vmem:[%s16 + $0x1c] sm:$0xf]
          %v1769 = vld [vmem:[%s16 + $0x20] sm:$0xf]
          %v1770 = vld [vmem:[%s16 + $0x24] sm:$0xf]
          %v1771 = vld [vmem:[%s16 + $0x28] sm:$0xf]
          %v1772 = vld [vmem:[%s16 + $0x2c] sm:$0xf]
          %v1773 = vld [vmem:[%s16 + $0x30] sm:$0xf]
          %v1774 = vld [vmem:[%s16 + $0x34] sm:$0xf]
          %v1775 = vld [vmem:[%s16 + $0x38] sm:$0xf]
          %v1776 = vld [vmem:[%s16 + $0x3c] sm:$0xf]
          %v1777 = vld [vmem:[%s17] sm:$0x1]
          %v1794 = vunpack.c.l.b16 %v1761
          %v1795 = vunpack.c.l.b16 %v1762
          %v1796 = vunpack.c.l.b16 %v1763
          %v1797 = vunpack.c.l.b16 %v1764
          %v1798 = vunpack.c.l.b16 %v1765
          %v1799 = vunpack.c.l.b16 %v1766
          %v1800 = vunpack.c.l.b16 %v1767
          %v1801 = vunpack.c.l.b16 %v1768
          %v1802 = vunpack.c.l.b16 %v1769
          %v1803 = vunpack.c.l.b16 %v1770
          %v1804 = vunpack.c.l.b16 %v1771
          %v1805 = vunpack.c.l.b16 %v1772
          %v1806 = vunpack.c.l.b16 %v1773
          %v1807 = vunpack.c.l.b16 %v1774
          %v1808 = vunpack.c.l.b16 %v1775
          %v1809 = vunpack.c.l.b16 %v1776
          %v1810 = vpack.c.b16 %v1795, %v1794
          %v1811 = vpack.c.b16 %v1797, %v1796
          %v1812 = vpack.c.b16 %v1799, %v1798
          %v1813 = vpack.c.b16 %v1801, %v1800
          %v1814 = vpack.c.b16 %v1803, %v1802
          %v1815 = vpack.c.b16 %v1805, %v1804
          %v1816 = vpack.c.b16 %v1807, %v1806
          %v1817 = vpack.c.b16 %v1809, %v1808
          %1826 = vmatpush.bf16.msra.mxu0 %v1817
          %1827 = vmatpush.bf16.msra.mxu0 %v1816
          %1828 = vmatpush.bf16.msra.mxu0 %v1815
          %1829 = vmatpush.bf16.msra.mxu0 %v1814
          %1830 = vmatpush.bf16.msra.mxu0 %v1813
          %1831 = vmatpush.bf16.msra.mxu0 %v1812
          %1832 = vmatpush.bf16.msra.mxu0 %v1811
          %1833 = vmatpush.bf16.msra.mxu0 %v1810
          %1834 = vmatmul.bf16.gmra.mxu0 %v1760
          %v1835 = vpop.f32.mrf.mxu0
          %v1836 = vadd.f32 %v1777, %v1835
          %v1837 = vpop.f32.mrf.mxu0
          %1838 = vdwg.mxu0
          %v1839 = vtanh.pop %v1836
          %v1840 = vpack.c.bf16 %v1839, %v1839
          %v1841 = vld [vmem:[%s18] sm:$0xf]
          %v1842 = vld [vmem:[%s18 + $0x4] sm:$0xf]
          %v1843 = vld [vmem:[%s18 + $0x8] sm:$0xf]
          %v1844 = vld [vmem:[%s18 + $0xc] sm:$0xf]
          %v1845 = vld [vmem:[%s18 + $0x10] sm:$0xf]
          %v1846 = vld [vmem:[%s18 + $0x14] sm:$0xf]
          %v1847 = vld [vmem:[%s18 + $0x18] sm:$0xf]
          %v1848 = vld [vmem:[%s18 + $0x1c] sm:$0xf]
          %v1849 = vld [vmem:[%s18 + $0x20] sm:$0xf]
          %v1850 = vld [vmem:[%s18 + $0x24] sm:$0xf]
          %v1851 = vld [vmem:[%s18 + $0x28] sm:$0xf]
          %v1852 = vld [vmem:[%s18 + $0x2c] sm:$0xf]
          %v1853 = vld [vmem:[%s18 + $0x30] sm:$0xf]
          %v1854 = vld [vmem:[%s18 + $0x34] sm:$0xf]
          %v1855 = vld [vmem:[%s18 + $0x38] sm:$0xf]
          %v1856 = vld [vmem:[%s18 + $0x3c] sm:$0xf]
          %v1857 = vld [vmem:[%s19] sm:$0x1]
          %v1874 = vunpack.c.l.b16 %v1841
          %v1875 = vunpack.c.l.b16 %v1842
          %v1876 = vunpack.c.l.b16 %v1843
          %v1877 = vunpack.c.l.b16 %v1844
          %v1878 = vunpack.c.l.b16 %v1845
          %v1879 = vunpack.c.l.b16 %v1846
          %v1880 = vunpack.c.l.b16 %v1847
          %v1881 = vunpack.c.l.b16 %v1848
          %v1882 = vunpack.c.l.b16 %v1849
          %v1883 = vunpack.c.l.b16 %v1850
          %v1884 = vunpack.c.l.b16 %v1851
          %v1885 = vunpack.c.l.b16 %v1852
          %v1886 = vunpack.c.l.b16 %v1853
          %v1887 = vunpack.c.l.b16 %v1854
          %v1888 = vunpack.c.l.b16 %v1855
          %v1889 = vunpack.c.l.b16 %v1856
          %v1890 = vpack.c.b16 %v1875, %v1874
          %v1891 = vpack.c.b16 %v1877, %v1876
          %v1892 = vpack.c.b16 %v1879, %v1878
          %v1893 = vpack.c.b16 %v1881, %v1880
          %v1894 = vpack.c.b16 %v1883, %v1882
          %v1895 = vpack.c.b16 %v1885, %v1884
          %v1896 = vpack.c.b16 %v1887, %v1886
          %v1897 = vpack.c.b16 %v1889, %v1888
          %1906 = vmatpush.bf16.msra.mxu0 %v1897
          %1907 = vmatpush.bf16.msra.mxu0 %v1896
          %1908 = vmatpush.bf16.msra.mxu0 %v1895
          %1909 = vmatpush.bf16.msra.mxu0 %v1894
          %1910 = vmatpush.bf16.msra.mxu0 %v1893
          %1911 = vmatpush.bf16.msra.mxu0 %v1892
          %1912 = vmatpush.bf16.msra.mxu0 %v1891
          %1913 = vmatpush.bf16.msra.mxu0 %v1890
          %1914 = vmatmul.bf16.gmra.mxu0 %v1840
          %v1915 = vpop.f32.mrf.mxu0
          %v1916 = vadd.f32 %v1857, %v1915
          %v1917 = vpop.f32.mrf.mxu0
          %1918 = vdwg.mxu0
          %v1919 = vsub.f32 0.0, %v1916
          %v1920 = vmul.f32 %v1919, 1.442695
          %v1921 = vpow.pop %v1920
          %v1922 = vadd.f32 %v1921, 1.0
          %v1923 = vrcp.pop %v1922
          %v1924 = vmax.f32 %v1923, 0.0
          %v1925 = vmin.f32 %v1924, 1.0
          %1926 = vst [vmem:[%s872] sm:$0x1] %v1925
        $region120: #{text_model_pred_forward.1} parent=99 // pred_fallthru
          _
        %s1927 = sand.u32 %s550, 1
        %s1928 = scalar_lea.sflag [#allocation6], %s1927
        %s1929 = sand.u32 %s550, 1
        %s1930 = scalar_lea.vmem [#allocation10], %s1929
        // Predicated region
        $region121: #{text_model_pred_forward.1} parent=99 // pred_check
          %p1931 = pneg %p560
        $region122: #{text_model_pred_forward.1} parent=99 // pred_check_branch
          %1933 = sbr.rel (%p1931) target = $region124
        $region123: #{text_model_pred_forward.1} parent=99 // pred_region
          %1935 = vsyncadd %s1928, 0
          %s1936 = scalar_lea.hbm %s20, %s44
          %s1938 = sshll.u32 %s1930, 4
          %s1939 = int_to_ptr.vmem [resolvable:$true] %s1938
          %s1940 = sshll.u32 %s1936, 4
          %s1941 = int_to_ptr.hbm [resolvable:$true] %s1940
          %1943 = dma.vmem_to_hbm [thread:$0]  %s1939, 16, %s1941, %s1928
        $region124: #{text_model_pred_forward.1} parent=99 // pred_fallthru
          _
      $region100: #{text_model_pred_forward.1} parent=5 // pred_fallthru
        _
      %p1944 = scmp.le.s32.totalorder 2, %s35
      // Predicated region
      $region125: #{text_model_pred_forward.1} parent=5 // pred_check
        %p1945 = pneg %p1944
      $region126: #{text_model_pred_forward.1} parent=5 // pred_check_branch
        %1947 = sbr.rel (%p1945) target = $region128
      $region127: #{text_model_pred_forward.1} parent=5 // pred_region
        %s1948 = ssub.s32 %s35, 2
        // Predicated region
        $region129: #{text_model_pred_forward.1} parent=127 // pred_check
          %p1949 = pneg %p566
        $region130: #{text_model_pred_forward.1} parent=127 // pred_check_branch
          %1951 = sbr.rel (%p1949) target = $region132
        $region131: #{text_model_pred_forward.1} parent=127 // pred_region
          %s1952 = sand.u32 %s551, 1
          %s1953 = scalar_lea.sflag [#allocation6], %s1952
          %s1954 = sand.u32 %s551, 1
          %s1955 = scalar_lea.vmem [#allocation10], %s1954
          %1957 = dma.done %s1953, 16
        $region132: #{text_model_pred_forward.1} parent=127 // pred_fallthru
          _
      $region128: #{text_model_pred_forward.1} parent=5 // pred_fallthru
        _
    $region6: #{text_model_pred_forward.1} parent=1 // loop_footer
      %s39 = sadd.s32 1, %s35
    $region7: #{text_model_pred_forward.1} parent=1 // loop_footer_branch
      %34 = sbr.rel target = $region3
    $region8: #{text_model_pred_forward.1} parent=1 // loop_exit
      _
    %1958 = vsyncpa [#allocation5], 1
    %s1959 = scalar_lea.sflag [#allocation5], 1
    %1960 = vsyncpa %s1959, 1
    %1961 = vsyncpa [#allocation8], 1
    %s1962 = scalar_lea.sflag [#allocation8], 1
    %1963 = vsyncpa %s1962, 1
    %1964 = vsyncpa [#allocation6], 1
    %s1965 = scalar_lea.sflag [#allocation6], 1
    %1966 = vsyncpa %s1965, 1

</llo_original>
